<compile_context>
chip_gen: v5e
topology: v5e:2x2
jax: 0.10.0
libtpu: 0.0.40
codegen_flags: <defaults>
</compile_context>

<pallas_src>
import jax
import jax.numpy as jnp
from jax.experimental import pallas as pl
from jax.experimental.pallas import tpu as pltpu


# ------------------------------ helpers -------------------------------------


def _round_up(v, m):
    return (v + m - 1) // m * m


def _conv_tile(buf, w_ref, bias, x_in, K, d, TL, hpad, j):
    """Causal dilated conv on one time tile using a persistent halo scratch.

    buf:   VMEM scratch (C_in_p, hpad + TL), compute dtype. Columns
           [hpad-p, hpad) hold the previous tile's last p = (K-1)*d positions.
    w_ref: (K, C_out_p, C_in_p) per-tap weights (compute dtype).
    bias:  (C_out_p, 1) f32.
    x_in:  (C_in_p, TL) f32 activations of the current tile.
    Returns relu(conv + bias) as (C_out_p, TL) f32.
    """
    p = (K - 1) * d
    C_in_p = buf.shape[0]
    C_out_p = w_ref.shape[1]

    if p > 0:
        @pl.when(j == 0)
        def _():  # causal zero history at the start of each sequence
            buf[:, :hpad] = jnp.zeros((C_in_p, hpad), buf.dtype)

    # Store the tile ONCE, lane-aligned (hpad and TL are multiples of 128).
    buf[:, hpad:hpad + TL] = x_in.astype(buf.dtype)

    # K accumulating matmuls (f32 accumulation); tap t looks back (K-1-t)*d.
    base = hpad - p
    acc = jnp.dot(w_ref[0], buf[:, base:base + TL],
                  preferred_element_type=jnp.float32)
    for t in range(1, K):
        off = base + t * d
        acc += jnp.dot(w_ref[t], buf[:, off:off + TL],
                       preferred_element_type=jnp.float32)

    if p > 0:
        # Carry: last p positions of this tile become the next tile's halo.
        carry = buf[:, hpad + TL - p: hpad + TL]
        buf[:, hpad - p:hpad] = carry

    return jnp.maximum(acc + bias, 0.0)


# ------------------------------ fused kernel --------------------------------


def _make_tcn_kernel(block_meta, K, TL, n_weight_refs):
    """block_meta: tuple of (dilation, has_downsample, hpad) per block.
    Ref order: per block [w1(K,oc,ic), b1, w2, b2, (wd, bd)] ..., x, o, scratch..."""

    def kernel(*refs):
        wrefs = refs[:n_weight_refs]
        x_ref = refs[n_weight_refs]
        o_ref = refs[n_weight_refs + 1]
        bufs = refs[n_weight_refs + 2:]

        j = pl.program_id(1)                       # time-tile index (sequential)
        h = x_ref[0].astype(jnp.float32)           # (C0_p, TL) block input, f32

        wi = 0
        for bi, (d, has_ds, hpad) in enumerate(block_meta):
            w1 = wrefs[wi]
            b1 = wrefs[wi + 1][...]
            w2 = wrefs[wi + 2]
            b2 = wrefs[wi + 3][...]
            wi += 4
            if has_ds:
                wd = wrefs[wi][...]
                bd = wrefs[wi + 1][...]
                wi += 2
            buf1 = bufs[2 * bi]
            buf2 = bufs[2 * bi + 1]

            x_in = h
            # conv1 -> chomp -> relu (dropout = inference identity)
            a = _conv_tile(buf1, w1, b1, x_in, K, d, TL, hpad, j)
            # conv2 -> chomp -> relu
            c = _conv_tile(buf2, w2, b2, a, K, d, TL, hpad, j)
            # residual path (kept in f32 for accuracy): 1x1 conv if channels change
            if has_ds:
                res = jnp.dot(wd, x_in, preferred_element_type=jnp.float32) + bd
            else:
                res = x_in
            h = jnp.maximum(c + res, 0.0)          # epilogue in f32

        o_ref[0] = h.astype(o_ref.dtype)

    return kernel


# ------------------------------ wrapper --------------------------------------


def tcn_forward(x, params, kernel_size, *, compute_dtype=jnp.bfloat16, time_tile=512):
    """x: (N, C_in, L) -> (N, num_channels[-1], L). Whole TCN in one pallas_call,
    time-tiled with a streaming receptive-field carry."""
    N, C_in, L = x.shape
    K = kernel_size

    TL = _round_up(min(int(time_tile), _round_up(max(L, 128), 128)), 128)
    Lp = _round_up(L, TL)
    T = Lp // TL
    C0p = _round_up(C_in, 8)

    # One-time pad of the network input. Causality => positions < L stay exact;
    # zero-padded channels stay zero through every block (zero weight rows / bias).
    x_pad = jnp.pad(x, ((0, 0), (0, C0p - C_in), (0, Lp - L)))
    x_itemsize = jnp.dtype(x.dtype).itemsize
    c_itemsize = jnp.dtype(compute_dtype).itemsize

    weights = []
    block_meta = []
    scratch_shapes = []
    scratch_bytes = 0
    flops = 0
    max_cp = C0p
    for i, p in enumerate(params):
        d = 2 ** i
        out_c, in_c, _ = p["w1"].shape
        in_cp = _round_up(in_c, 8)
        out_cp = _round_up(out_c, 8)
        max_cp = max(max_cp, out_cp)
        has_ds = p["wd"] is not None
        halo = (K - 1) * d
        hpad = _round_up(halo, 128) if halo > 0 else 0

        def prep_conv(w, b, ic, icp, oc, ocp):
            wp = jnp.pad(w, ((0, ocp - oc), (0, icp - ic), (0, 0)))
            w_taps = jnp.transpose(wp, (2, 0, 1)).astype(compute_dtype)  # (K,ocp,icp)
            bp = jnp.pad(b, (0, ocp - oc)).reshape(ocp, 1).astype(jnp.float32)
            return w_taps, bp

        w1, b1 = prep_conv(p["w1"], p["b1"], in_c, in_cp, out_c, out_cp)
        w2, b2 = prep_conv(p["w2"], p["b2"], out_c, out_cp, out_c, out_cp)
        weights += [w1, b1, w2, b2]
        if has_ds:
            # residual 1x1 conv stays f32 (accuracy of the residual stream)
            wd = jnp.pad(p["wd"][:, :, 0],
                         ((0, out_cp - out_c), (0, in_cp - in_c))).astype(jnp.float32)
            bd = jnp.pad(p["bd"], (0, out_cp - out_c)).reshape(out_cp, 1).astype(jnp.float32)
            weights += [wd, bd]

        block_meta.append((d, has_ds, hpad))
        # persistent halo scratch per conv (carry lives across time tiles)
        scratch_shapes.append(pltpu.VMEM((in_cp, hpad + TL), compute_dtype))
        scratch_shapes.append(pltpu.VMEM((out_cp, hpad + TL), compute_dtype))
        scratch_bytes += (in_cp + out_cp) * (hpad + TL) * c_itemsize

        flops += 2 * N * Lp * K * (in_cp * out_cp + out_cp * out_cp)
        if has_ds:
            flops += 2 * N * Lp * in_cp * out_cp

    C_last = params[-1]["w1"].shape[0]
    C_last_p = _round_up(C_last, 8)
    n_w = len(weights)

    def _const_map(ndim):
        return lambda n, j: (0,) * ndim

    # TODO(synk): weights are double-buffered by the default pipeline despite constant
    # index maps; pipeline_mode=pl.Buffered(1) would halve their VMEM residency.
    in_specs = [pl.BlockSpec(w.shape, _const_map(w.ndim)) for w in weights]
    in_specs.append(pl.BlockSpec((1, C0p, TL), lambda n, j: (n, 0, j)))
    out_specs = pl.BlockSpec((1, C_last_p, TL), lambda n, j: (n, 0, j))

    # Explicit VMEM budget from the real footprint (2x-buffered weights + I/O tiles +
    # halo scratch + margin for f32 intermediates), clamped so it also fits v7x (64 MiB).
    weight_bytes = sum(int(w.size) * w.dtype.itemsize for w in weights)
    io_bytes = 2 * C0p * TL * x_itemsize + 2 * C_last_p * TL * x_itemsize
    live_bytes = 4 * max_cp * TL * 4
    footprint = 2 * weight_bytes + scratch_bytes + io_bytes + live_bytes
    vmem_limit = int(min(max(2 * footprint, 16 << 20), 56 << 20))

    bytes_accessed = (
        int(x_pad.size) * x_itemsize
        + N * C_last_p * Lp * x_itemsize
        + weight_bytes
    )

    out = pl.pallas_call(
        _make_tcn_kernel(tuple(block_meta), K, TL, n_w),
        out_shape=jax.ShapeDtypeStruct((N, C_last_p, Lp), x.dtype),
        grid=(N, T),
        in_specs=in_specs,
        out_specs=out_specs,
        scratch_shapes=scratch_shapes,
        compiler_params=pltpu.CompilerParams(
            # time axis must be sequential (streaming carry); batch axis feeds megacore.
            dimension_semantics=("parallel", "arbitrary"),
            vmem_limit_bytes=vmem_limit,
        ),
        cost_estimate=pl.CostEstimate(
            flops=flops, transcendentals=0, bytes_accessed=bytes_accessed
        ),
    )(*weights, x_pad)

    return out[:, :C_last, :L]


# TODO(synk): dropout is omitted (inference-mode identity); training-mode RNG masking
# is not implemented in the kernel.
# TODO(synk): for tiny channel counts (<=64) several batch elements could be packed
# side-by-side along lanes per grid step to raise MXU utilization.


# ------------------------- parameter initialization -------------------------


def init_tcn_params(key, input_dim, num_channels, kernel_size):
    params = []
    for i, out_c in enumerate(num_channels):
        in_c = input_dim if i == 0 else num_channels[i - 1]
        key, k1, k2, k3, k4, k5, k6 = jax.random.split(key, 7)
        blk = {
            "w1": 0.1 * jax.random.normal(k1, (out_c, in_c, kernel_size), jnp.float32),
            "b1": 0.1 * jax.random.normal(k2, (out_c,), jnp.float32),
            "w2": 0.1 * jax.random.normal(k3, (out_c, out_c, kernel_size), jnp.float32),
            "b2": 0.1 * jax.random.normal(k4, (out_c,), jnp.float32),
        }
        if in_c != out_c:
            blk["wd"] = 0.1 * jax.random.normal(k5, (out_c, in_c, 1), jnp.float32)
            blk["bd"] = 0.1 * jax.random.normal(k6, (out_c,), jnp.float32)
        else:
            blk["wd"] = None
            blk["bd"] = None
        params.append(blk)
    return params


# ---------------------------- pure-JAX reference ----------------------------


def _ref_causal_conv(x, w, b, dilation):
    K = w.shape[-1]
    p = (K - 1) * dilation
    y = jax.lax.conv_general_dilated(
        x, w, window_strides=(1,), padding=[(p, 0)], rhs_dilation=(dilation,),
        dimension_numbers=("NCH", "OIH", "NCH"),
    )
    return y + b[None, :, None]


def tcn_reference(x, params):
    for i, p in enumerate(params):
        d = 2 ** i
        h = jax.nn.relu(_ref_causal_conv(x, p["w1"], p["b1"], d))
        h = jax.nn.relu(_ref_causal_conv(h, p["w2"], p["b2"], d))
        res = x if p["wd"] is None else _ref_causal_conv(x, p["wd"], p["bd"], 1)
        x = jax.nn.relu(h + res)
    return x


# ---------------------------------- main -------------------------------------

if __name__ == "__main__":
    key = jax.random.PRNGKey(0)
    x_key, x2_key, p_key = jax.random.split(key, 3)

    N, C_in, L = 2, 4, 16
    num_channels = (8, 8)   # first block downsamples (4->8), second identity residual
    kernel_size = 5

    x = jax.random.normal(x_key, (N, C_in, L), jnp.float32)
    params = init_tcn_params(p_key, C_in, num_channels, kernel_size)
    ref = tcn_reference(x, params)

    # f32 MXU path (tight check), single time tile
    out = jax.block_until_ready(
        tcn_forward(x, params, kernel_size, compute_dtype=jnp.float32)
    )
    assert out.shape == (N, num_channels[-1], L), out.shape
    assert jnp.allclose(out, ref, atol=1e-4, rtol=1e-4), float(
        jnp.max(jnp.abs(out - ref))
    )

    # multi-tile path (exercises the streaming receptive-field carry across tiles)
    L2 = 300
    x2 = jax.random.normal(x2_key, (N, C_in, L2), jnp.float32)
    ref2 = tcn_reference(x2, params)
    out2 = jax.block_until_ready(
        tcn_forward(x2, params, kernel_size, compute_dtype=jnp.float32, time_tile=128)
    )
    assert out2.shape == (N, num_channels[-1], L2), out2.shape
    assert jnp.allclose(out2, ref2, atol=1e-4, rtol=1e-4), float(
        jnp.max(jnp.abs(out2 - ref2))
    )

    # default bf16 MXU path (f32 accumulation + f32 epilogue/residual), loose check
    out_bf16 = jax.block_until_ready(tcn_forward(x, params, kernel_size))
    assert out_bf16.shape == ref.shape
    assert jnp.allclose(out_bf16, ref, atol=1e-1, rtol=1e-1), float(
        jnp.max(jnp.abs(out_bf16 - ref))
    )

    print("KERNEL_OK")
</pallas_src>

<mosaic_0001>
module attributes {stable_mosaic.version = 11 : i64} {
  func.func @kernel(%arg0: i32, %arg1: i32, %arg2: memref<5x8x8xf32, #tpu.memory_space<vmem>>, %arg3: memref<8x1xf32, #tpu.memory_space<vmem>>, %arg4: memref<5x8x8xf32, #tpu.memory_space<vmem>>, %arg5: memref<8x1xf32, #tpu.memory_space<vmem>>, %arg6: memref<8x8xf32, #tpu.memory_space<vmem>>, %arg7: memref<8x1xf32, #tpu.memory_space<vmem>>, %arg8: memref<5x8x8xf32, #tpu.memory_space<vmem>>, %arg9: memref<8x1xf32, #tpu.memory_space<vmem>>, %arg10: memref<5x8x8xf32, #tpu.memory_space<vmem>>, %arg11: memref<8x1xf32, #tpu.memory_space<vmem>>, %arg12: memref<1x8x128xf32, #tpu.memory_space<vmem>>, %arg13: memref<1x8x128xf32, #tpu.memory_space<vmem>>, %arg14: memref<8x256xf32, #tpu.memory_space<vmem>>, %arg15: memref<8x256xf32, #tpu.memory_space<vmem>>, %arg16: memref<8x256xf32, #tpu.memory_space<vmem>>, %arg17: memref<8x256xf32, #tpu.memory_space<vmem>>) attributes {dimension_semantics = [#tpu.dimension_semantics<parallel>, #tpu.dimension_semantics<arbitrary>], iteration_bounds = array<i64: 2, 1>, scalar_prefetch = 0 : i64, scratch_operands = 4 : i64, tpu.core_type = #tpu.core_type<tc>, window_params = [{pipeline_mode = #tpu.pipeline_mode<synchronous>, transform_indices = @transform_0, window_bounds = array<i64: 5, 8, 8>}, {pipeline_mode = #tpu.pipeline_mode<synchronous>, transform_indices = @transform_1, window_bounds = array<i64: 8, 1>}, {pipeline_mode = #tpu.pipeline_mode<synchronous>, transform_indices = @transform_2, window_bounds = array<i64: 5, 8, 8>}, {pipeline_mode = #tpu.pipeline_mode<synchronous>, transform_indices = @transform_3, window_bounds = array<i64: 8, 1>}, {pipeline_mode = #tpu.pipeline_mode<synchronous>, transform_indices = @transform_4, window_bounds = array<i64: 8, 8>}, {pipeline_mode = #tpu.pipeline_mode<synchronous>, transform_indices = @transform_5, window_bounds = array<i64: 8, 1>}, {pipeline_mode = #tpu.pipeline_mode<synchronous>, transform_indices = @transform_6, window_bounds = array<i64: 5, 8, 8>}, {pipeline_mode = #tpu.pipeline_mode<synchronous>, transform_indices = @transform_7, window_bounds = array<i64: 8, 1>}, {pipeline_mode = #tpu.pipeline_mode<synchronous>, transform_indices = @transform_8, window_bounds = array<i64: 5, 8, 8>}, {pipeline_mode = #tpu.pipeline_mode<synchronous>, transform_indices = @transform_9, window_bounds = array<i64: 8, 1>}, {transform_indices = @transform_10, window_bounds = array<i64: 1, 8, 128>}, {transform_indices = @transform_11, window_bounds = array<i64: 1, 8, 128>}]} {
    %c0 = arith.constant 0 : index
    %c0_0 = arith.constant 0 : index
    %c0_1 = arith.constant 0 : index
    %0 = vector.load %arg12[%c0, %c0_0, %c0_1] : memref<1x8x128xf32, #tpu.memory_space<vmem>>, vector<1x8x128xf32>
    %1 = vector.shape_cast %0 : vector<1x8x128xf32> to vector<8x128xf32>
    %c0_2 = arith.constant 0 : index
    %c0_3 = arith.constant 0 : index
    %2 = vector.load %arg3[%c0_2, %c0_3] : memref<8x1xf32, #tpu.memory_space<vmem>>, vector<8x1xf32>
    %c0_4 = arith.constant 0 : index
    %c0_5 = arith.constant 0 : index
    %3 = vector.load %arg5[%c0_4, %c0_5] : memref<8x1xf32, #tpu.memory_space<vmem>>, vector<8x1xf32>
    %c0_6 = arith.constant 0 : index
    %c0_7 = arith.constant 0 : index
    %4 = vector.load %arg6[%c0_6, %c0_7] : memref<8x8xf32, #tpu.memory_space<vmem>>, vector<8x8xf32>
    %c0_8 = arith.constant 0 : index
    %c0_9 = arith.constant 0 : index
    %5 = vector.load %arg7[%c0_8, %c0_9] : memref<8x1xf32, #tpu.memory_space<vmem>>, vector<8x1xf32>
    %c0_i32 = arith.constant 0 : i32
    %6 = arith.cmpi eq, %arg1, %c0_i32 : i32
    %7 = arith.extui %6 : i1 to i32
    %c0_i32_10 = arith.constant 0 : i32
    %8 = arith.cmpi ne, %7, %c0_i32_10 : i32
    scf.if %8 {
      %cst_161 = arith.constant 0.000000e+00 : f32
      %156 = vector.broadcast %cst_161 : f32 to vector<8x128xf32>
      %c0_162 = arith.constant 0 : index
      %c0_163 = arith.constant 0 : index
      %157 = vector.load %arg14[%c0_162, %c0_163] : memref<8x256xf32, #tpu.memory_space<vmem>>, vector<8x128xf32>
      tpu.vector_store %arg14[%c0_162, %c0_163], %156 {strides = array<i32>} : memref<8x256xf32, #tpu.memory_space<vmem>>, vector<8x128xf32>,
    } else {
    }
    %c0_11 = arith.constant 0 : index
    %c128 = arith.constant 128 : index
    %9 = vector.load %arg14[%c0_11, %c128] : memref<8x256xf32, #tpu.memory_space<vmem>>, vector<8x128xf32>
    tpu.vector_store %arg14[%c0_11, %c128], %1 {strides = array<i32>} : memref<8x256xf32, #tpu.memory_space<vmem>>, vector<8x128xf32>,
    %c0_12 = arith.constant 0 : index
    %c0_13 = arith.constant 0 : index
    %c0_14 = arith.constant 0 : index
    %10 = vector.load %arg2[%c0_12, %c0_13, %c0_14] : memref<5x8x8xf32, #tpu.memory_space<vmem>>, vector<1x8x8xf32>
    %11 = vector.shape_cast %10 : vector<1x8x8xf32> to vector<8x8xf32>
    %c0_15 = arith.constant 0 : index
    %c124 = arith.constant 124 : index
    %12 = vector.load %arg14[%c0_15, %c124] : memref<8x256xf32, #tpu.memory_space<vmem>>, vector<8x128xf32>
    %cst = arith.constant dense<0.000000e+00> : vector<8x128xf32>
    %13 = tpu.matmul %11, %12, %cst {dimension_numbers = #tpu.dot_dimension_numbers<[1], [0], [0], [1], [0, 0, 1, 1], [], []>} : vector<8x8xf32>, vector<8x128xf32>, vector<8x128xf32> -> vector<8x128xf32>
    %c1 = arith.constant 1 : index
    %c0_16 = arith.constant 0 : index
    %c0_17 = arith.constant 0 : index
    %14 = vector.load %arg2[%c1, %c0_16, %c0_17] : memref<5x8x8xf32, #tpu.memory_space<vmem>>, vector<1x8x8xf32>
    %15 = vector.shape_cast %14 : vector<1x8x8xf32> to vector<8x8xf32>
    %c0_18 = arith.constant 0 : index
    %c125 = arith.constant 125 : index
    %16 = vector.load %arg14[%c0_18, %c125] : memref<8x256xf32, #tpu.memory_space<vmem>>, vector<8x128xf32>
    %cst_19 = arith.constant dense<0.000000e+00> : vector<8x128xf32>
    %17 = tpu.matmul %15, %16, %cst_19 {dimension_numbers = #tpu.dot_dimension_numbers<[1], [0], [0], [1], [0, 0, 1, 1], [], []>} : vector<8x8xf32>, vector<8x128xf32>, vector<8x128xf32> -> vector<8x128xf32>
    %18 = arith.addf %13, %17 : vector<8x128xf32>
    %c2 = arith.constant 2 : index
    %c0_20 = arith.constant 0 : index
    %c0_21 = arith.constant 0 : index
    %19 = vector.load %arg2[%c2, %c0_20, %c0_21] : memref<5x8x8xf32, #tpu.memory_space<vmem>>, vector<1x8x8xf32>
    %20 = vector.shape_cast %19 : vector<1x8x8xf32> to vector<8x8xf32>
    %c0_22 = arith.constant 0 : index
    %c126 = arith.constant 126 : index
    %21 = vector.load %arg14[%c0_22, %c126] : memref<8x256xf32, #tpu.memory_space<vmem>>, vector<8x128xf32>
    %cst_23 = arith.constant dense<0.000000e+00> : vector<8x128xf32>
    %22 = tpu.matmul %20, %21, %cst_23 {dimension_numbers = #tpu.dot_dimension_numbers<[1], [0], [0], [1], [0, 0, 1, 1], [], []>} : vector<8x8xf32>, vector<8x128xf32>, vector<8x128xf32> -> vector<8x128xf32>
    %23 = arith.addf %18, %22 : vector<8x128xf32>
    %c3 = arith.constant 3 : index
    %c0_24 = arith.constant 0 : index
    %c0_25 = arith.constant 0 : index
    %24 = vector.load %arg2[%c3, %c0_24, %c0_25] : memref<5x8x8xf32, #tpu.memory_space<vmem>>, vector<1x8x8xf32>
    %25 = vector.shape_cast %24 : vector<1x8x8xf32> to vector<8x8xf32>
    %c0_26 = arith.constant 0 : index
    %c127 = arith.constant 127 : index
    %26 = vector.load %arg14[%c0_26, %c127] : memref<8x256xf32, #tpu.memory_space<vmem>>, vector<8x128xf32>
    %cst_27 = arith.constant dense<0.000000e+00> : vector<8x128xf32>
    %27 = tpu.matmul %25, %26, %cst_27 {dimension_numbers = #tpu.dot_dimension_numbers<[1], [0], [0], [1], [0, 0, 1, 1], [], []>} : vector<8x8xf32>, vector<8x128xf32>, vector<8x128xf32> -> vector<8x128xf32>
    %28 = arith.addf %23, %27 : vector<8x128xf32>
    %c4 = arith.constant 4 : index
    %c0_28 = arith.constant 0 : index
    %c0_29 = arith.constant 0 : index
    %29 = vector.load %arg2[%c4, %c0_28, %c0_29] : memref<5x8x8xf32, #tpu.memory_space<vmem>>, vector<1x8x8xf32>
    %30 = vector.shape_cast %29 : vector<1x8x8xf32> to vector<8x8xf32>
    %c0_30 = arith.constant 0 : index
    %c128_31 = arith.constant 128 : index
    %31 = vector.load %arg14[%c0_30, %c128_31] : memref<8x256xf32, #tpu.memory_space<vmem>>, vector<8x128xf32>
    %cst_32 = arith.constant dense<0.000000e+00> : vector<8x128xf32>
    %32 = tpu.matmul %30, %31, %cst_32 {dimension_numbers = #tpu.dot_dimension_numbers<[1], [0], [0], [1], [0, 0, 1, 1], [], []>} : vector<8x8xf32>, vector<8x128xf32>, vector<8x128xf32> -> vector<8x128xf32>
    %33 = arith.addf %28, %32 : vector<8x128xf32>
    %c0_33 = arith.constant 0 : index
    %c252 = arith.constant 252 : index
    %34 = vector.load %arg14[%c0_33, %c252] : memref<8x256xf32, #tpu.memory_space<vmem>>, vector<8x4xf32>
    %c0_34 = arith.constant 0 : index
    %c124_35 = arith.constant 124 : index
    %35 = vector.load %arg14[%c0_34, %c124_35] : memref<8x256xf32, #tpu.memory_space<vmem>>, vector<8x4xf32>
    tpu.vector_store %arg14[%c0_34, %c124_35], %34 {strides = array<i32>} : memref<8x256xf32, #tpu.memory_space<vmem>>, vector<8x4xf32>,
    %36 = vector.broadcast %2 : vector<8x1xf32> to vector<8x128xf32>
    %37 = arith.addf %33, %36 : vector<8x128xf32>
    %cst_36 = arith.constant 0.000000e+00 : f32
    %38 = vector.broadcast %cst_36 : f32 to vector<8x128xf32>
    %39 = arith.maximumf %37, %38 : vector<8x128xf32>
    %c0_i32_37 = arith.constant 0 : i32
    %40 = arith.cmpi eq, %arg1, %c0_i32_37 : i32
    %41 = arith.extui %40 : i1 to i32
    %c0_i32_38 = arith.constant 0 : i32
    %42 = arith.cmpi ne, %41, %c0_i32_38 : i32
    scf.if %42 {
      %cst_161 = arith.constant 0.000000e+00 : f32
      %156 = vector.broadcast %cst_161 : f32 to vector<8x128xf32>
      %c0_162 = arith.constant 0 : index
      %c0_163 = arith.constant 0 : index
      %157 = vector.load %arg15[%c0_162, %c0_163] : memref<8x256xf32, #tpu.memory_space<vmem>>, vector<8x128xf32>
      tpu.vector_store %arg15[%c0_162, %c0_163], %156 {strides = array<i32>} : memref<8x256xf32, #tpu.memory_space<vmem>>, vector<8x128xf32>,
    } else {
    }
    %c0_39 = arith.constant 0 : index
    %c128_40 = arith.constant 128 : index
    %43 = vector.load %arg15[%c0_39, %c128_40] : memref<8x256xf32, #tpu.memory_space<vmem>>, vector<8x128xf32>
    tpu.vector_store %arg15[%c0_39, %c128_40], %39 {strides = array<i32>} : memref<8x256xf32, #tpu.memory_space<vmem>>, vector<8x128xf32>,
    %c0_41 = arith.constant 0 : index
    %c0_42 = arith.constant 0 : index
    %c0_43 = arith.constant 0 : index
    %44 = vector.load %arg4[%c0_41, %c0_42, %c0_43] : memref<5x8x8xf32, #tpu.memory_space<vmem>>, vector<1x8x8xf32>
    %45 = vector.shape_cast %44 : vector<1x8x8xf32> to vector<8x8xf32>
    %c0_44 = arith.constant 0 : index
    %c124_45 = arith.constant 124 : index
    %46 = vector.load %arg15[%c0_44, %c124_45] : memref<8x256xf32, #tpu.memory_space<vmem>>, vector<8x128xf32>
    %cst_46 = arith.constant dense<0.000000e+00> : vector<8x128xf32>
    %47 = tpu.matmul %45, %46, %cst_46 {dimension_numbers = #tpu.dot_dimension_numbers<[1], [0], [0], [1], [0, 0, 1, 1], [], []>} : vector<8x8xf32>, vector<8x128xf32>, vector<8x128xf32> -> vector<8x128xf32>
    %c1_47 = arith.constant 1 : index
    %c0_48 = arith.constant 0 : index
    %c0_49 = arith.constant 0 : index
    %48 = vector.load %arg4[%c1_47, %c0_48, %c0_49] : memref<5x8x8xf32, #tpu.memory_space<vmem>>, vector<1x8x8xf32>
    %49 = vector.shape_cast %48 : vector<1x8x8xf32> to vector<8x8xf32>
    %c0_50 = arith.constant 0 : index
    %c125_51 = arith.constant 125 : index
    %50 = vector.load %arg15[%c0_50, %c125_51] : memref<8x256xf32, #tpu.memory_space<vmem>>, vector<8x128xf32>
    %cst_52 = arith.constant dense<0.000000e+00> : vector<8x128xf32>
    %51 = tpu.matmul %49, %50, %cst_52 {dimension_numbers = #tpu.dot_dimension_numbers<[1], [0], [0], [1], [0, 0, 1, 1], [], []>} : vector<8x8xf32>, vector<8x128xf32>, vector<8x128xf32> -> vector<8x128xf32>
    %52 = arith.addf %47, %51 : vector<8x128xf32>
    %c2_53 = arith.constant 2 : index
    %c0_54 = arith.constant 0 : index
    %c0_55 = arith.constant 0 : index
    %53 = vector.load %arg4[%c2_53, %c0_54, %c0_55] : memref<5x8x8xf32, #tpu.memory_space<vmem>>, vector<1x8x8xf32>
    %54 = vector.shape_cast %53 : vector<1x8x8xf32> to vector<8x8xf32>
    %c0_56 = arith.constant 0 : index
    %c126_57 = arith.constant 126 : index
    %55 = vector.load %arg15[%c0_56, %c126_57] : memref<8x256xf32, #tpu.memory_space<vmem>>, vector<8x128xf32>
    %cst_58 = arith.constant dense<0.000000e+00> : vector<8x128xf32>
    %56 = tpu.matmul %54, %55, %cst_58 {dimension_numbers = #tpu.dot_dimension_numbers<[1], [0], [0], [1], [0, 0, 1, 1], [], []>} : vector<8x8xf32>, vector<8x128xf32>, vector<8x128xf32> -> vector<8x128xf32>
    %57 = arith.addf %52, %56 : vector<8x128xf32>
    %c3_59 = arith.constant 3 : index
    %c0_60 = arith.constant 0 : index
    %c0_61 = arith.constant 0 : index
    %58 = vector.load %arg4[%c3_59, %c0_60, %c0_61] : memref<5x8x8xf32, #tpu.memory_space<vmem>>, vector<1x8x8xf32>
    %59 = vector.shape_cast %58 : vector<1x8x8xf32> to vector<8x8xf32>
    %c0_62 = arith.constant 0 : index
    %c127_63 = arith.constant 127 : index
    %60 = vector.load %arg15[%c0_62, %c127_63] : memref<8x256xf32, #tpu.memory_space<vmem>>, vector<8x128xf32>
    %cst_64 = arith.constant dense<0.000000e+00> : vector<8x128xf32>
    %61 = tpu.matmul %59, %60, %cst_64 {dimension_numbers = #tpu.dot_dimension_numbers<[1], [0], [0], [1], [0, 0, 1, 1], [], []>} : vector<8x8xf32>, vector<8x128xf32>, vector<8x128xf32> -> vector<8x128xf32>
    %62 = arith.addf %57, %61 : vector<8x128xf32>
    %c4_65 = arith.constant 4 : index
    %c0_66 = arith.constant 0 : index
    %c0_67 = arith.constant 0 : index
    %63 = vector.load %arg4[%c4_65, %c0_66, %c0_67] : memref<5x8x8xf32, #tpu.memory_space<vmem>>, vector<1x8x8xf32>
    %64 = vector.shape_cast %63 : vector<1x8x8xf32> to vector<8x8xf32>
    %c0_68 = arith.constant 0 : index
    %c128_69 = arith.constant 128 : index
    %65 = vector.load %arg15[%c0_68, %c128_69] : memref<8x256xf32, #tpu.memory_space<vmem>>, vector<8x128xf32>
    %cst_70 = arith.constant dense<0.000000e+00> : vector<8x128xf32>
    %66 = tpu.matmul %64, %65, %cst_70 {dimension_numbers = #tpu.dot_dimension_numbers<[1], [0], [0], [1], [0, 0, 1, 1], [], []>} : vector<8x8xf32>, vector<8x128xf32>, vector<8x128xf32> -> vector<8x128xf32>
    %67 = arith.addf %62, %66 : vector<8x128xf32>
    %c0_71 = arith.constant 0 : index
    %c252_72 = arith.constant 252 : index
    %68 = vector.load %arg15[%c0_71, %c252_72] : memref<8x256xf32, #tpu.memory_space<vmem>>, vector<8x4xf32>
    %c0_73 = arith.constant 0 : index
    %c124_74 = arith.constant 124 : index
    %69 = vector.load %arg15[%c0_73, %c124_74] : memref<8x256xf32, #tpu.memory_space<vmem>>, vector<8x4xf32>
    tpu.vector_store %arg15[%c0_73, %c124_74], %68 {strides = array<i32>} : memref<8x256xf32, #tpu.memory_space<vmem>>, vector<8x4xf32>,
    %70 = vector.broadcast %3 : vector<8x1xf32> to vector<8x128xf32>
    %71 = arith.addf %67, %70 : vector<8x128xf32>
    %cst_75 = arith.constant 0.000000e+00 : f32
    %72 = vector.broadcast %cst_75 : f32 to vector<8x128xf32>
    %73 = arith.maximumf %71, %72 : vector<8x128xf32>
    %cst_76 = arith.constant dense<0.000000e+00> : vector<8x128xf32>
    %74 = tpu.matmul %4, %1, %cst_76 {dimension_numbers = #tpu.dot_dimension_numbers<[1], [0], [0], [1], [0, 0, 1, 1], [], []>} : vector<8x8xf32>, vector<8x128xf32>, vector<8x128xf32> -> vector<8x128xf32>
    %75 = vector.broadcast %5 : vector<8x1xf32> to vector<8x128xf32>
    %76 = arith.addf %74, %75 : vector<8x128xf32>
    %77 = arith.addf %73, %76 : vector<8x128xf32>
    %cst_77 = arith.constant 0.000000e+00 : f32
    %78 = vector.broadcast %cst_77 : f32 to vector<8x128xf32>
    %79 = arith.maximumf %77, %78 : vector<8x128xf32>
    %c0_78 = arith.constant 0 : index
    %c0_79 = arith.constant 0 : index
    %80 = vector.load %arg9[%c0_78, %c0_79] : memref<8x1xf32, #tpu.memory_space<vmem>>, vector<8x1xf32>
    %c0_80 = arith.constant 0 : index
    %c0_81 = arith.constant 0 : index
    %81 = vector.load %arg11[%c0_80, %c0_81] : memref<8x1xf32, #tpu.memory_space<vmem>>, vector<8x1xf32>
    %c0_i32_82 = arith.constant 0 : i32
    %82 = arith.cmpi eq, %arg1, %c0_i32_82 : i32
    %83 = arith.extui %82 : i1 to i32
    %c0_i32_83 = arith.constant 0 : i32
    %84 = arith.cmpi ne, %83, %c0_i32_83 : i32
    scf.if %84 {
      %cst_161 = arith.constant 0.000000e+00 : f32
      %156 = vector.broadcast %cst_161 : f32 to vector<8x128xf32>
      %c0_162 = arith.constant 0 : index
      %c0_163 = arith.constant 0 : index
      %157 = vector.load %arg16[%c0_162, %c0_163] : memref<8x256xf32, #tpu.memory_space<vmem>>, vector<8x128xf32>
      tpu.vector_store %arg16[%c0_162, %c0_163], %156 {strides = array<i32>} : memref<8x256xf32, #tpu.memory_space<vmem>>, vector<8x128xf32>,
    } else {
    }
    %c0_84 = arith.constant 0 : index
    %c128_85 = arith.constant 128 : index
    %85 = vector.load %arg16[%c0_84, %c128_85] : memref<8x256xf32, #tpu.memory_space<vmem>>, vector<8x128xf32>
    tpu.vector_store %arg16[%c0_84, %c128_85], %79 {strides = array<i32>} : memref<8x256xf32, #tpu.memory_space<vmem>>, vector<8x128xf32>,
    %c0_86 = arith.constant 0 : index
    %c0_87 = arith.constant 0 : index
    %c0_88 = arith.constant 0 : index
    %86 = vector.load %arg8[%c0_86, %c0_87, %c0_88] : memref<5x8x8xf32, #tpu.memory_space<vmem>>, vector<1x8x8xf32>
    %87 = vector.shape_cast %86 : vector<1x8x8xf32> to vector<8x8xf32>
    %c0_89 = arith.constant 0 : index
    %c120 = arith.constant 120 : index
    %88 = vector.load %arg16[%c0_89, %c120] : memref<8x256xf32, #tpu.memory_space<vmem>>, vector<8x128xf32>
    %cst_90 = arith.constant dense<0.000000e+00> : vector<8x128xf32>
    %89 = tpu.matmul %87, %88, %cst_90 {dimension_numbers = #tpu.dot_dimension_numbers<[1], [0], [0], [1], [0, 0, 1, 1], [], []>} : vector<8x8xf32>, vector<8x128xf32>, vector<8x128xf32> -> vector<8x128xf32>
    %c1_91 = arith.constant 1 : index
    %c0_92 = arith.constant 0 : index
    %c0_93 = arith.constant 0 : index
    %90 = vector.load %arg8[%c1_91, %c0_92, %c0_93] : memref<5x8x8xf32, #tpu.memory_space<vmem>>, vector<1x8x8xf32>
    %91 = vector.shape_cast %90 : vector<1x8x8xf32> to vector<8x8xf32>
    %c0_94 = arith.constant 0 : index
    %c122 = arith.constant 122 : index
    %92 = vector.load %arg16[%c0_94, %c122] : memref<8x256xf32, #tpu.memory_space<vmem>>, vector<8x128xf32>
    %cst_95 = arith.constant dense<0.000000e+00> : vector<8x128xf32>
    %93 = tpu.matmul %91, %92, %cst_95 {dimension_numbers = #tpu.dot_dimension_numbers<[1], [0], [0], [1], [0, 0, 1, 1], [], []>} : vector<8x8xf32>, vector<8x128xf32>, vector<8x128xf32> -> vector<8x128xf32>
    %94 = arith.addf %89, %93 : vector<8x128xf32>
    %c2_96 = arith.constant 2 : index
    %c0_97 = arith.constant 0 : index
    %c0_98 = arith.constant 0 : index
    %95 = vector.load %arg8[%c2_96, %c0_97, %c0_98] : memref<5x8x8xf32, #tpu.memory_space<vmem>>, vector<1x8x8xf32>
    %96 = vector.shape_cast %95 : vector<1x8x8xf32> to vector<8x8xf32>
    %c0_99 = arith.constant 0 : index
    %c124_100 = arith.constant 124 : index
    %97 = vector.load %arg16[%c0_99, %c124_100] : memref<8x256xf32, #tpu.memory_space<vmem>>, vector<8x128xf32>
    %cst_101 = arith.constant dense<0.000000e+00> : vector<8x128xf32>
    %98 = tpu.matmul %96, %97, %cst_101 {dimension_numbers = #tpu.dot_dimension_numbers<[1], [0], [0], [1], [0, 0, 1, 1], [], []>} : vector<8x8xf32>, vector<8x128xf32>, vector<8x128xf32> -> vector<8x128xf32>
    %99 = arith.addf %94, %98 : vector<8x128xf32>
    %c3_102 = arith.constant 3 : index
    %c0_103 = arith.constant 0 : index
    %c0_104 = arith.constant 0 : index
    %100 = vector.load %arg8[%c3_102, %c0_103, %c0_104] : memref<5x8x8xf32, #tpu.memory_space<vmem>>, vector<1x8x8xf32>
    %101 = vector.shape_cast %100 : vector<1x8x8xf32> to vector<8x8xf32>
    %c0_105 = arith.constant 0 : index
    %c126_106 = arith.constant 126 : index
    %102 = vector.load %arg16[%c0_105, %c126_106] : memref<8x256xf32, #tpu.memory_space<vmem>>, vector<8x128xf32>
    %cst_107 = arith.constant dense<0.000000e+00> : vector<8x128xf32>
    %103 = tpu.matmul %101, %102, %cst_107 {dimension_numbers = #tpu.dot_dimension_numbers<[1], [0], [0], [1], [0, 0, 1, 1], [], []>} : vector<8x8xf32>, vector<8x128xf32>, vector<8x128xf32> -> vector<8x128xf32>
    %104 = arith.addf %99, %103 : vector<8x128xf32>
    %c4_108 = arith.constant 4 : index
    %c0_109 = arith.constant 0 : index
    %c0_110 = arith.constant 0 : index
    %105 = vector.load %arg8[%c4_108, %c0_109, %c0_110] : memref<5x8x8xf32, #tpu.memory_space<vmem>>, vector<1x8x8xf32>
    %106 = vector.shape_cast %105 : vector<1x8x8xf32> to vector<8x8xf32>
    %c0_111 = arith.constant 0 : index
    %c128_112 = arith.constant 128 : index
    %107 = vector.load %arg16[%c0_111, %c128_112] : memref<8x256xf32, #tpu.memory_space<vmem>>, vector<8x128xf32>
    %cst_113 = arith.constant dense<0.000000e+00> : vector<8x128xf32>
    %108 = tpu.matmul %106, %107, %cst_113 {dimension_numbers = #tpu.dot_dimension_numbers<[1], [0], [0], [1], [0, 0, 1, 1], [], []>} : vector<8x8xf32>, vector<8x128xf32>, vector<8x128xf32> -> vector<8x128xf32>
    %109 = arith.addf %104, %108 : vector<8x128xf32>
    %c0_114 = arith.constant 0 : index
    %c248 = arith.constant 248 : index
    %110 = vector.load %arg16[%c0_114, %c248] : memref<8x256xf32, #tpu.memory_space<vmem>>, vector<8x8xf32>
    %c0_115 = arith.constant 0 : index
    %c120_116 = arith.constant 120 : index
    %111 = vector.load %arg16[%c0_115, %c120_116] : memref<8x256xf32, #tpu.memory_space<vmem>>, vector<8x8xf32>
    tpu.vector_store %arg16[%c0_115, %c120_116], %110 {strides = array<i32>} : memref<8x256xf32, #tpu.memory_space<vmem>>, vector<8x8xf32>,
    %112 = vector.broadcast %80 : vector<8x1xf32> to vector<8x128xf32>
    %113 = arith.addf %109, %112 : vector<8x128xf32>
    %cst_117 = arith.constant 0.000000e+00 : f32
    %114 = vector.broadcast %cst_117 : f32 to vector<8x128xf32>
    %115 = arith.maximumf %113, %114 : vector<8x128xf32>
    %c0_i32_118 = arith.constant 0 : i32
    %116 = arith.cmpi eq, %arg1, %c0_i32_118 : i32
    %117 = arith.extui %116 : i1 to i32
    %c0_i32_119 = arith.constant 0 : i32
    %118 = arith.cmpi ne, %117, %c0_i32_119 : i32
    scf.if %118 {
      %cst_161 = arith.constant 0.000000e+00 : f32
      %156 = vector.broadcast %cst_161 : f32 to vector<8x128xf32>
      %c0_162 = arith.constant 0 : index
      %c0_163 = arith.constant 0 : index
      %157 = vector.load %arg17[%c0_162, %c0_163] : memref<8x256xf32, #tpu.memory_space<vmem>>, vector<8x128xf32>
      tpu.vector_store %arg17[%c0_162, %c0_163], %156 {strides = array<i32>} : memref<8x256xf32, #tpu.memory_space<vmem>>, vector<8x128xf32>,
    } else {
    }
    %c0_120 = arith.constant 0 : index
    %c128_121 = arith.constant 128 : index
    %119 = vector.load %arg17[%c0_120, %c128_121] : memref<8x256xf32, #tpu.memory_space<vmem>>, vector<8x128xf32>
    tpu.vector_store %arg17[%c0_120, %c128_121], %115 {strides = array<i32>} : memref<8x256xf32, #tpu.memory_space<vmem>>, vector<8x128xf32>,
    %c0_122 = arith.constant 0 : index
    %c0_123 = arith.constant 0 : index
    %c0_124 = arith.constant 0 : index
    %120 = vector.load %arg10[%c0_122, %c0_123, %c0_124] : memref<5x8x8xf32, #tpu.memory_space<vmem>>, vector<1x8x8xf32>
    %121 = vector.shape_cast %120 : vector<1x8x8xf32> to vector<8x8xf32>
    %c0_125 = arith.constant 0 : index
    %c120_126 = arith.constant 120 : index
    %122 = vector.load %arg17[%c0_125, %c120_126] : memref<8x256xf32, #tpu.memory_space<vmem>>, vector<8x128xf32>
    %cst_127 = arith.constant dense<0.000000e+00> : vector<8x128xf32>
    %123 = tpu.matmul %121, %122, %cst_127 {dimension_numbers = #tpu.dot_dimension_numbers<[1], [0], [0], [1], [0, 0, 1, 1], [], []>} : vector<8x8xf32>, vector<8x128xf32>, vector<8x128xf32> -> vector<8x128xf32>
    %c1_128 = arith.constant 1 : index
    %c0_129 = arith.constant 0 : index
    %c0_130 = arith.constant 0 : index
    %124 = vector.load %arg10[%c1_128, %c0_129, %c0_130] : memref<5x8x8xf32, #tpu.memory_space<vmem>>, vector<1x8x8xf32>
    %125 = vector.shape_cast %124 : vector<1x8x8xf32> to vector<8x8xf32>
    %c0_131 = arith.constant 0 : index
    %c122_132 = arith.constant 122 : index
    %126 = vector.load %arg17[%c0_131, %c122_132] : memref<8x256xf32, #tpu.memory_space<vmem>>, vector<8x128xf32>
    %cst_133 = arith.constant dense<0.000000e+00> : vector<8x128xf32>
    %127 = tpu.matmul %125, %126, %cst_133 {dimension_numbers = #tpu.dot_dimension_numbers<[1], [0], [0], [1], [0, 0, 1, 1], [], []>} : vector<8x8xf32>, vector<8x128xf32>, vector<8x128xf32> -> vector<8x128xf32>
    %128 = arith.addf %123, %127 : vector<8x128xf32>
    %c2_134 = arith.constant 2 : index
    %c0_135 = arith.constant 0 : index
    %c0_136 = arith.constant 0 : index
    %129 = vector.load %arg10[%c2_134, %c0_135, %c0_136] : memref<5x8x8xf32, #tpu.memory_space<vmem>>, vector<1x8x8xf32>
    %130 = vector.shape_cast %129 : vector<1x8x8xf32> to vector<8x8xf32>
    %c0_137 = arith.constant 0 : index
    %c124_138 = arith.constant 124 : index
    %131 = vector.load %arg17[%c0_137, %c124_138] : memref<8x256xf32, #tpu.memory_space<vmem>>, vector<8x128xf32>
    %cst_139 = arith.constant dense<0.000000e+00> : vector<8x128xf32>
    %132 = tpu.matmul %130, %131, %cst_139 {dimension_numbers = #tpu.dot_dimension_numbers<[1], [0], [0], [1], [0, 0, 1, 1], [], []>} : vector<8x8xf32>, vector<8x128xf32>, vector<8x128xf32> -> vector<8x128xf32>
    %133 = arith.addf %128, %132 : vector<8x128xf32>
    %c3_140 = arith.constant 3 : index
    %c0_141 = arith.constant 0 : index
    %c0_142 = arith.constant 0 : index
    %134 = vector.load %arg10[%c3_140, %c0_141, %c0_142] : memref<5x8x8xf32, #tpu.memory_space<vmem>>, vector<1x8x8xf32>
    %135 = vector.shape_cast %134 : vector<1x8x8xf32> to vector<8x8xf32>
    %c0_143 = arith.constant 0 : index
    %c126_144 = arith.constant 126 : index
    %136 = vector.load %arg17[%c0_143, %c126_144] : memref<8x256xf32, #tpu.memory_space<vmem>>, vector<8x128xf32>
    %cst_145 = arith.constant dense<0.000000e+00> : vector<8x128xf32>
    %137 = tpu.matmul %135, %136, %cst_145 {dimension_numbers = #tpu.dot_dimension_numbers<[1], [0], [0], [1], [0, 0, 1, 1], [], []>} : vector<8x8xf32>, vector<8x128xf32>, vector<8x128xf32> -> vector<8x128xf32>
    %138 = arith.addf %133, %137 : vector<8x128xf32>
    %c4_146 = arith.constant 4 : index
    %c0_147 = arith.constant 0 : index
    %c0_148 = arith.constant 0 : index
    %139 = vector.load %arg10[%c4_146, %c0_147, %c0_148] : memref<5x8x8xf32, #tpu.memory_space<vmem>>, vector<1x8x8xf32>
    %140 = vector.shape_cast %139 : vector<1x8x8xf32> to vector<8x8xf32>
    %c0_149 = arith.constant 0 : index
    %c128_150 = arith.constant 128 : index
    %141 = vector.load %arg17[%c0_149, %c128_150] : memref<8x256xf32, #tpu.memory_space<vmem>>, vector<8x128xf32>
    %cst_151 = arith.constant dense<0.000000e+00> : vector<8x128xf32>
    %142 = tpu.matmul %140, %141, %cst_151 {dimension_numbers = #tpu.dot_dimension_numbers<[1], [0], [0], [1], [0, 0, 1, 1], [], []>} : vector<8x8xf32>, vector<8x128xf32>, vector<8x128xf32> -> vector<8x128xf32>
    %143 = arith.addf %138, %142 : vector<8x128xf32>
    %c0_152 = arith.constant 0 : index
    %c248_153 = arith.constant 248 : index
    %144 = vector.load %arg17[%c0_152, %c248_153] : memref<8x256xf32, #tpu.memory_space<vmem>>, vector<8x8xf32>
    %c0_154 = arith.constant 0 : index
    %c120_155 = arith.constant 120 : index
    %145 = vector.load %arg17[%c0_154, %c120_155] : memref<8x256xf32, #tpu.memory_space<vmem>>, vector<8x8xf32>
    tpu.vector_store %arg17[%c0_154, %c120_155], %144 {strides = array<i32>} : memref<8x256xf32, #tpu.memory_space<vmem>>, vector<8x8xf32>,
    %146 = vector.broadcast %81 : vector<8x1xf32> to vector<8x128xf32>
    %147 = arith.addf %143, %146 : vector<8x128xf32>
    %cst_156 = arith.constant 0.000000e+00 : f32
    %148 = vector.broadcast %cst_156 : f32 to vector<8x128xf32>
    %149 = arith.maximumf %147, %148 : vector<8x128xf32>
    %150 = arith.addf %149, %79 : vector<8x128xf32>
    %cst_157 = arith.constant 0.000000e+00 : f32
    %151 = vector.broadcast %cst_157 : f32 to vector<8x128xf32>
    %152 = arith.maximumf %150, %151 : vector<8x128xf32>
    %c0_158 = arith.constant 0 : index
    %c0_159 = arith.constant 0 : index
    %c0_160 = arith.constant 0 : index
    %153 = vector.load %arg13[%c0_158, %c0_159, %c0_160] : memref<1x8x128xf32, #tpu.memory_space<vmem>>, vector<1x8x128xf32>
    %154 = vector.shape_cast %153 : vector<1x8x128xf32> to vector<8x128xf32>
    %155 = vector.shape_cast %152 : vector<8x128xf32> to vector<1x8x128xf32>
    tpu.vector_store %arg13[%c0_158, %c0_159, %c0_160], %155 {strides = array<i32>} : memref<1x8x128xf32, #tpu.memory_space<vmem>>, vector<1x8x128xf32>,
    return
  }
  func.func @transform_0(%arg0: i32, %arg1: i32) -> (i32, i32, i32) {
    %c0_i32 = arith.constant 0 : i32
    %c0_i32_0 = arith.constant 0 : i32
    %c0_i32_1 = arith.constant 0 : i32
    %c0_i32_2 = arith.constant 0 : i32
    return %c0_i32, %c0_i32_0, %c0_i32_1 : i32, i32, i32
  }
  func.func @transform_1(%arg0: i32, %arg1: i32) -> (i32, i32) {
    %c0_i32 = arith.constant 0 : i32
    %c0_i32_0 = arith.constant 0 : i32
    %c0_i32_1 = arith.constant 0 : i32
    return %c0_i32, %c0_i32_0 : i32, i32
  }
  func.func @transform_2(%arg0: i32, %arg1: i32) -> (i32, i32, i32) {
    %c0_i32 = arith.constant 0 : i32
    %c0_i32_0 = arith.constant 0 : i32
    %c0_i32_1 = arith.constant 0 : i32
    %c0_i32_2 = arith.constant 0 : i32
    return %c0_i32, %c0_i32_0, %c0_i32_1 : i32, i32, i32
  }
  func.func @transform_3(%arg0: i32, %arg1: i32) -> (i32, i32) {
    %c0_i32 = arith.constant 0 : i32
    %c0_i32_0 = arith.constant 0 : i32
    %c0_i32_1 = arith.constant 0 : i32
    return %c0_i32, %c0_i32_0 : i32, i32
  }
  func.func @transform_4(%arg0: i32, %arg1: i32) -> (i32, i32) {
    %c0_i32 = arith.constant 0 : i32
    %c0_i32_0 = arith.constant 0 : i32
    %c0_i32_1 = arith.constant 0 : i32
    return %c0_i32, %c0_i32_0 : i32, i32
  }
  func.func @transform_5(%arg0: i32, %arg1: i32) -> (i32, i32) {
    %c0_i32 = arith.constant 0 : i32
    %c0_i32_0 = arith.constant 0 : i32
    %c0_i32_1 = arith.constant 0 : i32
    return %c0_i32, %c0_i32_0 : i32, i32
  }
  func.func @transform_6(%arg0: i32, %arg1: i32) -> (i32, i32, i32) {
    %c0_i32 = arith.constant 0 : i32
    %c0_i32_0 = arith.constant 0 : i32
    %c0_i32_1 = arith.constant 0 : i32
    %c0_i32_2 = arith.constant 0 : i32
    return %c0_i32, %c0_i32_0, %c0_i32_1 : i32, i32, i32
  }
  func.func @transform_7(%arg0: i32, %arg1: i32) -> (i32, i32) {
    %c0_i32 = arith.constant 0 : i32
    %c0_i32_0 = arith.constant 0 : i32
    %c0_i32_1 = arith.constant 0 : i32
    return %c0_i32, %c0_i32_0 : i32, i32
  }
  func.func @transform_8(%arg0: i32, %arg1: i32) -> (i32, i32, i32) {
    %c0_i32 = arith.constant 0 : i32
    %c0_i32_0 = arith.constant 0 : i32
    %c0_i32_1 = arith.constant 0 : i32
    %c0_i32_2 = arith.constant 0 : i32
    return %c0_i32, %c0_i32_0, %c0_i32_1 : i32, i32, i32
  }
  func.func @transform_9(%arg0: i32, %arg1: i32) -> (i32, i32) {
    %c0_i32 = arith.constant 0 : i32
    %c0_i32_0 = arith.constant 0 : i32
    %c0_i32_1 = arith.constant 0 : i32
    return %c0_i32, %c0_i32_0 : i32, i32
  }
  func.func @transform_10(%arg0: i32, %arg1: i32) -> (i32, i32, i32) {
    %c0_i32 = arith.constant 0 : i32
    %c0_i32_0 = arith.constant 0 : i32
    return %arg0, %c0_i32, %arg1 : i32, i32, i32
  }
  func.func @transform_11(%arg0: i32, %arg1: i32) -> (i32, i32, i32) {
    %c0_i32 = arith.constant 0 : i32
    %c0_i32_0 = arith.constant 0 : i32
    return %arg0, %c0_i32, %arg1 : i32, i32, i32
  }
}

</mosaic_0001>

<llo_original>
// kernel: tpu_custom_call.1
$region0: #{tpu_custom_call.1}
  #allocation0 [shape = 'u32[]', space=smem, size = 0x4, offset = 0x4, fixed_abs, tag = 'smem constant byte address 0x4 - core index']
  #allocation1 [shape = 'u32[72,128]{1,0:T(1,128)}', space=vmem, size = 0x9000, scoped, tag = 'internal scratch']
  #allocation2 [shape = 'f32[8,256]{1,0:T(8,128)}', space=vmem, size = 0x2000, scoped, tag = 'scratch operand']
  #allocation3 [shape = 'f32[8,256]{1,0:T(8,128)}', space=vmem, size = 0x2000, scoped, tag = 'scratch operand']
  #allocation4 [shape = 'f32[8,256]{1,0:T(8,128)}', space=vmem, size = 0x2000, scoped, tag = 'scratch operand']
  #allocation5 [shape = 'f32[8,256]{1,0:T(8,128)}', space=vmem, size = 0x2000, scoped, tag = 'scratch operand']
  %s0 = inlined_call_operand.vmem [shape: f32[5,8,8], index: 0, kind: input, shape index: {}]
  %s1 = inlined_call_operand.vmem [shape: f32[8,1], index: 1, kind: input, shape index: {}]
  %s2 = inlined_call_operand.hbm [shape: f32[5,8,8], index: 2, kind: input, shape index: {}]
  %s3 = inlined_call_operand.vmem [shape: f32[8,1], index: 3, kind: input, shape index: {}]
  %s4 = inlined_call_operand.vmem [shape: f32[8,8], index: 4, kind: input, shape index: {}]
  %s5 = inlined_call_operand.vmem [shape: f32[8,1], index: 5, kind: input, shape index: {}]
  %s6 = inlined_call_operand.hbm [shape: f32[5,8,8], index: 6, kind: input, shape index: {}]
  %s7 = inlined_call_operand.vmem [shape: f32[8,1], index: 7, kind: input, shape index: {}]
  %s8 = inlined_call_operand.hbm [shape: f32[5,8,8], index: 8, kind: input, shape index: {}]
  %s9 = inlined_call_operand.vmem [shape: f32[8,1], index: 9, kind: input, shape index: {}]
  %s10 = inlined_call_operand.hbm [shape: f32[2,8,128], index: 10, kind: input, shape index: {}]
  %s11 = inlined_call_operand.hbm [shape: f32[2,8,128], index: 11, kind: output, shape index: {}]
  %s12 = sld [smem:[#allocation0]]
  $region109: #{tpu_custom_call.1} parent=0
    _
  %s14 = ssub.s32 1, %s12
  %s15 = scalar_select 0, %s14, %s12
  $region1: #{tpu_custom_call.1} parent=0
    #allocation6 [shape = 'u8[20480]{0}', space=vmem, size = 0x5000, scoped, tag = 'input window, operand 2, single buffered']
    #allocation7 [shape = 's32[2]{0}', space=sflag, size = 0x8, scoped, tag = 'scoped memory for tpu_custom_call.1']
    #allocation8 [shape = 's32[2]{0}', space=sflag, size = 0x8, scoped, tag = 'scoped memory for tpu_custom_call.1']
    #allocation9 [shape = 'u8[20480]{0}', space=vmem, size = 0x5000, scoped, tag = 'input window, operand 6, single buffered']
    #allocation10 [shape = 's32[1]{0}', space=sflag, size = 0x4, scoped, tag = 'scoped memory for tpu_custom_call.1']
    #allocation11 [shape = 'u8[20480]{0}', space=vmem, size = 0x5000, scoped, tag = 'input window, operand 8, single buffered']
    #allocation12 [shape = 'u8[8192]{0}', space=vmem, size = 0x2000, scoped, tag = 'input window, operand 10']
    #allocation13 [shape = 's32[2]{0}', space=sflag, size = 0x8, scoped, tag = 'scoped memory for tpu_custom_call.1']
    #allocation14 [shape = 'u8[8192]{0}', space=vmem, size = 0x2000, scoped, tag = 'output window, operand 0']
    %16 = vsyncpa [#allocation7], 0
    %17 = vsyncpa [#allocation10], 0
    %18 = vsyncpa [#allocation13], 0
    %s19 = scalar_lea.sflag [#allocation13], 1
    %20 = vsyncpa %s19, 0
    %21 = vsyncpa [#allocation8], 0
    %s22 = scalar_lea.sflag [#allocation8], 1
    %23 = vsyncpa %s22, 0
    loop: start=0, step=1, limit=4
    $region2: #{tpu_custom_call.1} parent=1 // loop_pre_header
      _
    $region3: #{tpu_custom_call.1} parent=1 // loop_header
      %s25 = sphi 0, %s29
      %p26 = scmp.ge.s32.totalorder %s25, 4
      %s32 = sphi 0, %s44
      %s33 = sphi 0, %s40
      %s34 = sphi 0, %s32
      %s35 = sphi 0, %s33
      %s36 = sphi 0, %s34
      %s37 = sphi 0, %s35
      %s45 = sphi 0, %s45
      %s47 = sphi 0, %s45
      %s48 = sphi 0, %s47
      %s62 = sphi 0, %s48
      %s66 = sphi 0, %s66
      %s68 = sphi 0, %s66
      %s69 = sphi 0, %s68
      %s83 = sphi 0, %s69
      %s87 = sphi 0, %s87
      %s89 = sphi 0, %s87
      %s90 = sphi 0, %s89
      %s104 = sphi 0, %s90
      %s108 = sphi 0, %s108
      %s110 = sphi 0, %s108
      %s111 = sphi 0, %s110
      %s125 = sphi 0, %s111
      %s129 = sphi 0, %s129
      %s131 = sphi 0, %s129
      %s132 = sphi 0, %s131
      %s146 = sphi 0, %s132
      %s150 = sphi 0, %s150
      %s152 = sphi 0, %s150
      %s153 = sphi 0, %s152
      %s167 = sphi 0, %s153
      %s171 = sphi 0, %s171
      %s173 = sphi 0, %s171
      %s174 = sphi 0, %s173
      %s188 = sphi 0, %s174
      %s192 = sphi 0, %s192
      %s194 = sphi 0, %s192
      %s195 = sphi 0, %s194
      %s209 = sphi 0, %s195
      %s213 = sphi 0, %s213
      %s215 = sphi 0, %s213
      %s216 = sphi 0, %s215
      %s230 = sphi 0, %s216
      %s234 = sphi 0, %s234
      %s236 = sphi 0, %s234
      %s237 = sphi 0, %s236
      %s251 = sphi 0, %s237
      %s259 = sphi 0, %s261
      %s262 = sphi 0, %s259
      %s263 = sphi 0, %s262
      %s279 = sphi 0, %s263
      %s287 = sphi 0, %s289
      %s290 = sphi 0, %s287
      %s291 = sphi 0, %s290
      %s307 = sphi 0, %s291
    $region4: #{tpu_custom_call.1} parent=1 // loop_header_branch
      %28 = sbr.rel (%p26) target = $region8
    $region5: #{tpu_custom_call.1} parent=1 // loop_body
      %s30 = ssub.s32 %s25, 1
      %s31 = ssub.s32 %s25, 2
      %s38 = sadd.s32 1, %s33
      %p39 = scmp.ge.s32.totalorder %s38, 1
      %s40 = scalar_select %p39, 0, %s38
      %s41 = sadd.s32 1, %s32
      %s42 = scalar_select %p39, %s41, %s32
      %p43 = scmp.ge.s32.totalorder %s42, 2
      %s44 = scalar_select %p43, 0, %s42
      %s46 = sadd.s32 %s45, 1
      %p49 = scmp.eq.s32.totalorder %s25, 1
      %p50 = scmp.ne.s32.totalorder %s45, %s47
      %p51 = scmp.eq.s32.totalorder %s25, 0
      %p52 = por %p50, %p51
      %p53 = scmp.ne.s32.totalorder %s45, %s47
      %p54 = scmp.eq.s32.totalorder %s30, 1
      %p55 = por %p53, %p54
      %p56 = scmp.ne.s32.totalorder %s47, %s48
      %p57 = scmp.eq.s32.totalorder %s30, 0
      %p58 = por %p56, %p57
      %p59 = scmp.ne.s32.totalorder %s47, %s48
      %p60 = scmp.eq.s32.totalorder %s31, 1
      %p61 = por %p59, %p60
      %p63 = scmp.ne.s32.totalorder %s48, %s62
      %p64 = scmp.eq.s32.totalorder %s31, 0
      %p65 = por %p63, %p64
      %s67 = sadd.s32 %s66, 1
      %p70 = scmp.eq.s32.totalorder %s25, 1
      %p71 = scmp.ne.s32.totalorder %s66, %s68
      %p72 = scmp.eq.s32.totalorder %s25, 0
      %p73 = por %p71, %p72
      %p74 = scmp.ne.s32.totalorder %s66, %s68
      %p75 = scmp.eq.s32.totalorder %s30, 1
      %p76 = por %p74, %p75
      %p77 = scmp.ne.s32.totalorder %s68, %s69
      %p78 = scmp.eq.s32.totalorder %s30, 0
      %p79 = por %p77, %p78
      %p80 = scmp.ne.s32.totalorder %s68, %s69
      %p81 = scmp.eq.s32.totalorder %s31, 1
      %p82 = por %p80, %p81
      %p84 = scmp.ne.s32.totalorder %s69, %s83
      %p85 = scmp.eq.s32.totalorder %s31, 0
      %p86 = por %p84, %p85
      %s88 = sadd.s32 %s87, 1
      %p91 = scmp.eq.s32.totalorder %s25, 1
      %p92 = scmp.ne.s32.totalorder %s87, %s89
      %p93 = scmp.eq.s32.totalorder %s25, 0
      %p94 = por %p92, %p93
      %p95 = scmp.ne.s32.totalorder %s87, %s89
      %p96 = scmp.eq.s32.totalorder %s30, 1
      %p97 = por %p95, %p96
      %p98 = scmp.ne.s32.totalorder %s89, %s90
      %p99 = scmp.eq.s32.totalorder %s30, 0
      %p100 = por %p98, %p99
      %p101 = scmp.ne.s32.totalorder %s89, %s90
      %p102 = scmp.eq.s32.totalorder %s31, 1
      %p103 = por %p101, %p102
      %p105 = scmp.ne.s32.totalorder %s90, %s104
      %p106 = scmp.eq.s32.totalorder %s31, 0
      %p107 = por %p105, %p106
      %s109 = sadd.s32 %s108, 1
      %p112 = scmp.eq.s32.totalorder %s25, 1
      %p113 = scmp.ne.s32.totalorder %s108, %s110
      %p114 = scmp.eq.s32.totalorder %s25, 0
      %p115 = por %p113, %p114
      %p116 = scmp.ne.s32.totalorder %s108, %s110
      %p117 = scmp.eq.s32.totalorder %s30, 1
      %p118 = por %p116, %p117
      %p119 = scmp.ne.s32.totalorder %s110, %s111
      %p120 = scmp.eq.s32.totalorder %s30, 0
      %p121 = por %p119, %p120
      %p122 = scmp.ne.s32.totalorder %s110, %s111
      %p123 = scmp.eq.s32.totalorder %s31, 1
      %p124 = por %p122, %p123
      %p126 = scmp.ne.s32.totalorder %s111, %s125
      %p127 = scmp.eq.s32.totalorder %s31, 0
      %p128 = por %p126, %p127
      %s130 = sadd.s32 %s129, 1
      %p133 = scmp.eq.s32.totalorder %s25, 1
      %p134 = scmp.ne.s32.totalorder %s129, %s131
      %p135 = scmp.eq.s32.totalorder %s25, 0
      %p136 = por %p134, %p135
      %p137 = scmp.ne.s32.totalorder %s129, %s131
      %p138 = scmp.eq.s32.totalorder %s30, 1
      %p139 = por %p137, %p138
      %p140 = scmp.ne.s32.totalorder %s131, %s132
      %p141 = scmp.eq.s32.totalorder %s30, 0
      %p142 = por %p140, %p141
      %p143 = scmp.ne.s32.totalorder %s131, %s132
      %p144 = scmp.eq.s32.totalorder %s31, 1
      %p145 = por %p143, %p144
      %p147 = scmp.ne.s32.totalorder %s132, %s146
      %p148 = scmp.eq.s32.totalorder %s31, 0
      %p149 = por %p147, %p148
      %s151 = sadd.s32 %s150, 1
      %p154 = scmp.eq.s32.totalorder %s25, 1
      %p155 = scmp.ne.s32.totalorder %s150, %s152
      %p156 = scmp.eq.s32.totalorder %s25, 0
      %p157 = por %p155, %p156
      %p158 = scmp.ne.s32.totalorder %s150, %s152
      %p159 = scmp.eq.s32.totalorder %s30, 1
      %p160 = por %p158, %p159
      %p161 = scmp.ne.s32.totalorder %s152, %s153
      %p162 = scmp.eq.s32.totalorder %s30, 0
      %p163 = por %p161, %p162
      %p164 = scmp.ne.s32.totalorder %s152, %s153
      %p165 = scmp.eq.s32.totalorder %s31, 1
      %p166 = por %p164, %p165
      %p168 = scmp.ne.s32.totalorder %s153, %s167
      %p169 = scmp.eq.s32.totalorder %s31, 0
      %p170 = por %p168, %p169
      %s172 = sadd.s32 %s171, 1
      %p175 = scmp.eq.s32.totalorder %s25, 1
      %p176 = scmp.ne.s32.totalorder %s171, %s173
      %p177 = scmp.eq.s32.totalorder %s25, 0
      %p178 = por %p176, %p177
      %p179 = scmp.ne.s32.totalorder %s171, %s173
      %p180 = scmp.eq.s32.totalorder %s30, 1
      %p181 = por %p179, %p180
      %p182 = scmp.ne.s32.totalorder %s173, %s174
      %p183 = scmp.eq.s32.totalorder %s30, 0
      %p184 = por %p182, %p183
      %p185 = scmp.ne.s32.totalorder %s173, %s174
      %p186 = scmp.eq.s32.totalorder %s31, 1
      %p187 = por %p185, %p186
      %p189 = scmp.ne.s32.totalorder %s174, %s188
      %p190 = scmp.eq.s32.totalorder %s31, 0
      %p191 = por %p189, %p190
      %s193 = sadd.s32 %s192, 1
      %p196 = scmp.eq.s32.totalorder %s25, 1
      %p197 = scmp.ne.s32.totalorder %s192, %s194
      %p198 = scmp.eq.s32.totalorder %s25, 0
      %p199 = por %p197, %p198
      %p200 = scmp.ne.s32.totalorder %s192, %s194
      %p201 = scmp.eq.s32.totalorder %s30, 1
      %p202 = por %p200, %p201
      %p203 = scmp.ne.s32.totalorder %s194, %s195
      %p204 = scmp.eq.s32.totalorder %s30, 0
      %p205 = por %p203, %p204
      %p206 = scmp.ne.s32.totalorder %s194, %s195
      %p207 = scmp.eq.s32.totalorder %s31, 1
      %p208 = por %p206, %p207
      %p210 = scmp.ne.s32.totalorder %s195, %s209
      %p211 = scmp.eq.s32.totalorder %s31, 0
      %p212 = por %p210, %p211
      %s214 = sadd.s32 %s213, 1
      %p217 = scmp.eq.s32.totalorder %s25, 1
      %p218 = scmp.ne.s32.totalorder %s213, %s215
      %p219 = scmp.eq.s32.totalorder %s25, 0
      %p220 = por %p218, %p219
      %p221 = scmp.ne.s32.totalorder %s213, %s215
      %p222 = scmp.eq.s32.totalorder %s30, 1
      %p223 = por %p221, %p222
      %p224 = scmp.ne.s32.totalorder %s215, %s216
      %p225 = scmp.eq.s32.totalorder %s30, 0
      %p226 = por %p224, %p225
      %p227 = scmp.ne.s32.totalorder %s215, %s216
      %p228 = scmp.eq.s32.totalorder %s31, 1
      %p229 = por %p227, %p228
      %p231 = scmp.ne.s32.totalorder %s216, %s230
      %p232 = scmp.eq.s32.totalorder %s31, 0
      %p233 = por %p231, %p232
      %s235 = sadd.s32 %s234, 1
      %p238 = scmp.eq.s32.totalorder %s25, 1
      %p239 = scmp.ne.s32.totalorder %s234, %s236
      %p240 = scmp.eq.s32.totalorder %s25, 0
      %p241 = por %p239, %p240
      %p242 = scmp.ne.s32.totalorder %s234, %s236
      %p243 = scmp.eq.s32.totalorder %s30, 1
      %p244 = por %p242, %p243
      %p245 = scmp.ne.s32.totalorder %s236, %s237
      %p246 = scmp.eq.s32.totalorder %s30, 0
      %p247 = por %p245, %p246
      %p248 = scmp.ne.s32.totalorder %s236, %s237
      %p249 = scmp.eq.s32.totalorder %s31, 1
      %p250 = por %p248, %p249
      %p252 = scmp.ne.s32.totalorder %s237, %s251
      %p253 = scmp.eq.s32.totalorder %s31, 0
      %p254 = por %p252, %p253
      %s255 = ssub.s32 %s32, %s44
      %s256 = ssub.s32 %s33, %s40
      %s257 = sor.u32 %s255, %s256
      %p258 = scmp.eq.s32.totalorder %s257, 0
      %s260 = sadd.s32 %s259, 1
      %s261 = scalar_select %p258, %s259, %s260
      %p264 = pneg %p258
      %p265 = scmp.eq.s32.totalorder %s25, 1
      %p266 = por %p264, %p265
      %p267 = scmp.ne.s32.totalorder %s259, %s262
      %p268 = scmp.eq.s32.totalorder %s25, 0
      %p269 = por %p267, %p268
      %p270 = scmp.ne.s32.totalorder %s259, %s262
      %p271 = scmp.eq.s32.totalorder %s30, 1
      %p272 = por %p270, %p271
      %p273 = scmp.ne.s32.totalorder %s262, %s263
      %p274 = scmp.eq.s32.totalorder %s30, 0
      %p275 = por %p273, %p274
      %p276 = scmp.ne.s32.totalorder %s262, %s263
      %p277 = scmp.eq.s32.totalorder %s31, 1
      %p278 = por %p276, %p277
      %p280 = scmp.ne.s32.totalorder %s263, %s279
      %p281 = scmp.eq.s32.totalorder %s31, 0
      %p282 = por %p280, %p281
      %s283 = ssub.s32 %s32, %s44
      %s284 = ssub.s32 %s33, %s40
      %s285 = sor.u32 %s283, %s284
      %p286 = scmp.eq.s32.totalorder %s285, 0
      %s288 = sadd.s32 %s287, 1
      %s289 = scalar_select %p286, %s287, %s288
      %p292 = pneg %p286
      %p293 = scmp.eq.s32.totalorder %s25, 1
      %p294 = por %p292, %p293
      %p295 = scmp.ne.s32.totalorder %s287, %s290
      %p296 = scmp.eq.s32.totalorder %s25, 0
      %p297 = por %p295, %p296
      %p298 = scmp.ne.s32.totalorder %s287, %s290
      %p299 = scmp.eq.s32.totalorder %s30, 1
      %p300 = por %p298, %p299
      %p301 = scmp.ne.s32.totalorder %s290, %s291
      %p302 = scmp.eq.s32.totalorder %s30, 0
      %p303 = por %p301, %p302
      %p304 = scmp.ne.s32.totalorder %s290, %s291
      %p305 = scmp.eq.s32.totalorder %s31, 1
      %p306 = por %p304, %p305
      %p308 = scmp.ne.s32.totalorder %s291, %s307
      %p309 = scmp.eq.s32.totalorder %s31, 0
      %p310 = por %p308, %p309
      %p311 = scmp.le.s32.totalorder 1, %s25
      %p312 = scmp.lt.s32.totalorder %s25, 3
      %p313 = pnand %p311, %p312
      %p314 = pneg %p313
      // Predicated region
      $region9: #{tpu_custom_call.1} parent=5 // pred_check
        _
      $region10: #{tpu_custom_call.1} parent=5 // pred_check_branch
        %316 = sbr.rel (%p313) target = $region12
      $region11: #{tpu_custom_call.1} parent=5 // pred_region
        %s317 = ssub.s32 %s25, 1
        // Predicated region
        $region13: #{tpu_custom_call.1} parent=11 // pred_check
          %p318 = pneg %p58
        $region14: #{tpu_custom_call.1} parent=11 // pred_check_branch
          %320 = sbr.rel (%p318) target = $region16
        $region15: #{tpu_custom_call.1} parent=11 // pred_region
          _
        $region16: #{tpu_custom_call.1} parent=11 // pred_fallthru
          _
        // Predicated region
        $region17: #{tpu_custom_call.1} parent=11 // pred_check
          %p321 = pneg %p79
        $region18: #{tpu_custom_call.1} parent=11 // pred_check_branch
          %323 = sbr.rel (%p321) target = $region20
        $region19: #{tpu_custom_call.1} parent=11 // pred_region
          _
        $region20: #{tpu_custom_call.1} parent=11 // pred_fallthru
          _
        // Predicated region
        $region21: #{tpu_custom_call.1} parent=11 // pred_check
          %p324 = pneg %p100
        $region22: #{tpu_custom_call.1} parent=11 // pred_check_branch
          %326 = sbr.rel (%p324) target = $region24
        $region23: #{tpu_custom_call.1} parent=11 // pred_region
          %328 = vsyncadd [#allocation7], 0
          %s329 = sshll.u32 %s2, 4
          %s330 = int_to_ptr.hbm [resolvable:$true] %s329
          %s331 = sshll.u32 [#allocation6], 4
          %s332 = int_to_ptr.vmem [resolvable:$true] %s331
          %337 = dma.hbm_to_vmem [thread:$0]  %s330, 640, %s332, [#allocation7], 128, 128, 8
        $region24: #{tpu_custom_call.1} parent=11 // pred_fallthru
          _
        // Predicated region
        $region25: #{tpu_custom_call.1} parent=11 // pred_check
          %p338 = pneg %p121
        $region26: #{tpu_custom_call.1} parent=11 // pred_check_branch
          %340 = sbr.rel (%p338) target = $region28
        $region27: #{tpu_custom_call.1} parent=11 // pred_region
          _
        $region28: #{tpu_custom_call.1} parent=11 // pred_fallthru
          _
        // Predicated region
        $region29: #{tpu_custom_call.1} parent=11 // pred_check
          %p341 = pneg %p142
        $region30: #{tpu_custom_call.1} parent=11 // pred_check_branch
          %343 = sbr.rel (%p341) target = $region32
        $region31: #{tpu_custom_call.1} parent=11 // pred_region
          _
        $region32: #{tpu_custom_call.1} parent=11 // pred_fallthru
          _
        // Predicated region
        $region33: #{tpu_custom_call.1} parent=11 // pred_check
          %p344 = pneg %p163
        $region34: #{tpu_custom_call.1} parent=11 // pred_check_branch
          %346 = sbr.rel (%p344) target = $region36
        $region35: #{tpu_custom_call.1} parent=11 // pred_region
          _
        $region36: #{tpu_custom_call.1} parent=11 // pred_fallthru
          _
        // Predicated region
        $region37: #{tpu_custom_call.1} parent=11 // pred_check
          %p347 = pneg %p184
        $region38: #{tpu_custom_call.1} parent=11 // pred_check_branch
          %349 = sbr.rel (%p347) target = $region40
        $region39: #{tpu_custom_call.1} parent=11 // pred_region
          %351 = vsyncadd [#allocation10], 0
          %s352 = sshll.u32 %s6, 4
          %s353 = int_to_ptr.hbm [resolvable:$true] %s352
          %s354 = sshll.u32 [#allocation9], 4
          %s355 = int_to_ptr.vmem [resolvable:$true] %s354
          %360 = dma.hbm_to_vmem [thread:$0]  %s353, 640, %s355, [#allocation10], 128, 128, 8
        $region40: #{tpu_custom_call.1} parent=11 // pred_fallthru
          _
        // Predicated region
        $region41: #{tpu_custom_call.1} parent=11 // pred_check
          %p361 = pneg %p205
        $region42: #{tpu_custom_call.1} parent=11 // pred_check_branch
          %363 = sbr.rel (%p361) target = $region44
        $region43: #{tpu_custom_call.1} parent=11 // pred_region
          _
        $region44: #{tpu_custom_call.1} parent=11 // pred_fallthru
          _
        // Predicated region
        $region45: #{tpu_custom_call.1} parent=11 // pred_check
          %p364 = pneg %p226
        $region46: #{tpu_custom_call.1} parent=11 // pred_check_branch
          %366 = sbr.rel (%p364) target = $region48
        $region47: #{tpu_custom_call.1} parent=11 // pred_region
          %368 = vsyncadd [#allocation10], 0
          %s369 = sshll.u32 %s8, 4
          %s370 = int_to_ptr.hbm [resolvable:$true] %s369
          %s371 = sshll.u32 [#allocation11], 4
          %s372 = int_to_ptr.vmem [resolvable:$true] %s371
          %377 = dma.hbm_to_vmem [thread:$0]  %s370, 640, %s372, [#allocation10], 128, 128, 8
        $region48: #{tpu_custom_call.1} parent=11 // pred_fallthru
          _
        // Predicated region
        $region49: #{tpu_custom_call.1} parent=11 // pred_check
          %p378 = pneg %p247
        $region50: #{tpu_custom_call.1} parent=11 // pred_check_branch
          %380 = sbr.rel (%p378) target = $region52
        $region51: #{tpu_custom_call.1} parent=11 // pred_region
          _
        $region52: #{tpu_custom_call.1} parent=11 // pred_fallthru
          _
      $region12: #{tpu_custom_call.1} parent=5 // pred_fallthru
        _
      %p381 = scmp.lt.s32.totalorder %s25, 2
      // Predicated region
      $region53: #{tpu_custom_call.1} parent=5 // pred_check
        %p382 = pneg %p381
      $region54: #{tpu_custom_call.1} parent=5 // pred_check_branch
        %384 = sbr.rel (%p382) target = $region56
      $region55: #{tpu_custom_call.1} parent=5 // pred_region
        // Predicated region
        $region57: #{tpu_custom_call.1} parent=55 // pred_check
          %p385 = pneg %p269
        $region58: #{tpu_custom_call.1} parent=55 // pred_check_branch
          %387 = sbr.rel (%p385) target = $region60
        $region59: #{tpu_custom_call.1} parent=55 // pred_region
          %s388 = sand.u32 %s259, 1
          %s389 = scalar_lea.sflag [#allocation13], %s388
          %s390 = sand.u32 %s259, 1
          %s391 = smul.addr %s390, 8
          %s392 = scalar_lea.vmem [#allocation12], %s391
          %394 = vsyncadd %s389, 0
          %s395 = sadd.s32 %s33, %s32
          %s396 = smul.addr %s395, 8
          %s397 = scalar_lea.hbm %s10, %s396
          %s399 = sshll.u32 %s397, 4
          %s400 = int_to_ptr.hbm [resolvable:$true] %s399
          %s401 = sshll.u32 %s392, 4
          %s402 = int_to_ptr.vmem [resolvable:$true] %s401
          %404 = dma.hbm_to_vmem [thread:$0]  %s400, 128, %s402, %s389
        $region60: #{tpu_custom_call.1} parent=55 // pred_fallthru
          _
      $region56: #{tpu_custom_call.1} parent=5 // pred_fallthru
        _
      %p405 = scmp.le.s32.totalorder 1, %s25
      %p406 = scmp.lt.s32.totalorder %s25, 3
      %p407 = pnand %p405, %p406
      %p408 = pneg %p407
      // Predicated region
      $region61: #{tpu_custom_call.1} parent=5 // pred_check
        _
      $region62: #{tpu_custom_call.1} parent=5 // pred_check_branch
        %410 = sbr.rel (%p407) target = $region64
      $region63: #{tpu_custom_call.1} parent=5 // pred_region
        %s411 = ssub.s32 %s25, 1
        // Predicated region
        $region65: #{tpu_custom_call.1} parent=63 // pred_check
          %p412 = pneg %p100
        $region66: #{tpu_custom_call.1} parent=63 // pred_check_branch
          %414 = sbr.rel (%p412) target = $region68
        $region67: #{tpu_custom_call.1} parent=63 // pred_region
          %416 = dma.done [#allocation7], 640
        $region68: #{tpu_custom_call.1} parent=63 // pred_fallthru
          _
        // Predicated region
        $region69: #{tpu_custom_call.1} parent=63 // pred_check
          %p417 = pneg %p184
        $region70: #{tpu_custom_call.1} parent=63 // pred_check_branch
          %419 = sbr.rel (%p417) target = $region72
        $region71: #{tpu_custom_call.1} parent=63 // pred_region
          %421 = dma.done [#allocation10], 640
        $region72: #{tpu_custom_call.1} parent=63 // pred_fallthru
          _
        // Predicated region
        $region73: #{tpu_custom_call.1} parent=63 // pred_check
          %p422 = pneg %p226
        $region74: #{tpu_custom_call.1} parent=63 // pred_check_branch
          %424 = sbr.rel (%p422) target = $region76
        $region75: #{tpu_custom_call.1} parent=63 // pred_region
          %426 = dma.done [#allocation10], 640
        $region76: #{tpu_custom_call.1} parent=63 // pred_fallthru
          _
        %s427 = sand.u32 %s262, 1
        %s428 = scalar_lea.sflag [#allocation13], %s427
        %s429 = sand.u32 %s262, 1
        %s430 = smul.addr %s429, 8
        %s431 = scalar_lea.vmem [#allocation12], %s430
        // Predicated region
        $region77: #{tpu_custom_call.1} parent=63 // pred_check
          %p432 = pneg %p275
        $region78: #{tpu_custom_call.1} parent=63 // pred_check_branch
          %434 = sbr.rel (%p432) target = $region80
        $region79: #{tpu_custom_call.1} parent=63 // pred_region
          %436 = dma.done %s428, 128
        $region80: #{tpu_custom_call.1} parent=63 // pred_fallthru
          _
        %p437 = pneg %p58
        %p438 = pneg %p55
        %p439 = pneg %p79
        %p440 = pneg %p76
        %p441 = pneg %p100
        %p442 = pneg %p97
        %p443 = pneg %p121
        %p444 = pneg %p118
        %p445 = pneg %p142
        %p446 = pneg %p139
        %p447 = pneg %p163
        %p448 = pneg %p160
        %p449 = pneg %p184
        %p450 = pneg %p181
        %p451 = pneg %p205
        %p452 = pneg %p202
        %p453 = pneg %p226
        %p454 = pneg %p223
        %p455 = pneg %p247
        %p456 = pneg %p244
        %s457 = sand.u32 %s262, 1
        %s458 = scalar_lea.sflag [#allocation13], %s457
        %s459 = sand.u32 %s262, 1
        %s460 = smul.addr %s459, 8
        %s461 = scalar_lea.vmem [#allocation12], %s460
        %p462 = pneg %p275
        %p463 = pneg %p272
        %p464 = pneg %p303
        %p465 = pneg %p300
        %s466 = sand.u32 %s290, 1
        %s467 = scalar_lea.sflag [#allocation8], %s466
        %s468 = sand.u32 %s290, 1
        %s469 = smul.addr %s468, 8
        %s470 = scalar_lea.vmem [#allocation14], %s469
        %v471 = vld [vmem:[%s431] sm:$0xff]
        %v472 = vld [vmem:[%s1] sm:$0xff]
        %v473 = vld [vmem:[%s3] sm:$0xff]
        %v474 = vld [vmem:[%s4] sm:$0xff]
        %v475 = vld [vmem:[%s5] sm:$0xff]
        %p476 = scmp.eq.s32.totalorder %s35, 0
        // Predicated region
        $region81: #{tpu_custom_call.1} parent=63 // pred_check
          %p477 = pneg %p476
        $region82: #{tpu_custom_call.1} parent=63 // pred_check_branch
          %479 = sbr.rel (%p477) target = $region84
        $region83: #{tpu_custom_call.1} parent=63 // pred_region
          %480 = vst [vmem:[#allocation2] sm:$0xff] 0.0
        $region84: #{tpu_custom_call.1} parent=63 // pred_fallthru
          _
        %481 = vst [vmem:[#allocation2 + $0x8] sm:$0xff] %v471
        %v482 = vld [vmem:[%s0] sm:$0xff]
        %v483 = vld [vmem:[#allocation2] sm:$0xff]
        %v484 = vld [vmem:[#allocation2 + $0x8] sm:$0xff]
        %s485 = scalar_lea.vmem %s0, 8
        %v486 = vld [vmem:[%s485] sm:$0xff]
        %489 = vrot.lane.b32.xlu0 %v483, 3
        %v490 = vpop.permute.xlu0 %489
        %491 = vrot.lane.b32.xlu0 %v484, 3
        %v492 = vpop.permute.xlu0 %491
        %vm493 = vcmask 23552
        %v494 = vsel %vm493, %v490, %v492
        %vm496 = vcmask 64512
        %v498 = vsel %vm496, %v486, 0
        %500 = vmatpush.msra.mxu0 0.0
        %501 = vmatpush.msra.mxu0 0.0
        %502 = vmatpush.msra.mxu0 0.0
        %503 = vmatpush.msra.mxu0 0.0
        %504 = vmatpush.msra.mxu0 0.0
        %505 = vmatpush.msra.mxu0 0.0
        %506 = vmatpush.msra.mxu0 0.0
        %507 = vmatpush.msra.mxu0 0.0
        %508 = vmatpush.msra.mxu0 0.0
        %509 = vmatpush.msra.mxu0 0.0
        %510 = vmatpush.msra.mxu0 0.0
        %511 = vmatpush.msra.mxu0 0.0
        %512 = vmatpush.msra.mxu0 0.0
        %513 = vmatpush.msra.mxu0 0.0
        %514 = vmatpush.msra.mxu0 0.0
        %515 = vmatpush.msra.mxu0 %v494
        %516 = vmatmul.f32.gmra.mxu0 %v498
        %v517 = vpop.f32.mrf.mxu0
        %v518 = vadd.f32 0.0, %v517
        %519 = vdwg.mxu0
        %520 = vrot.lane.b32.xlu0 %v483, 4
        %v521 = vpop.permute.xlu0 %520
        %522 = vrot.lane.b32.xlu0 %v484, 4
        %v523 = vpop.permute.xlu0 %522
        %vm524 = vcmask 31744
        %v525 = vsel %vm524, %v521, %v523
        %v528 = vsel %vm496, %v482, 0
        %530 = vmatpush.msra.mxu0 0.0
        %531 = vmatpush.msra.mxu0 0.0
        %532 = vmatpush.msra.mxu0 0.0
        %533 = vmatpush.msra.mxu0 0.0
        %534 = vmatpush.msra.mxu0 0.0
        %535 = vmatpush.msra.mxu0 0.0
        %536 = vmatpush.msra.mxu0 0.0
        %537 = vmatpush.msra.mxu0 0.0
        %538 = vmatpush.msra.mxu0 0.0
        %539 = vmatpush.msra.mxu0 0.0
        %540 = vmatpush.msra.mxu0 0.0
        %541 = vmatpush.msra.mxu0 0.0
        %542 = vmatpush.msra.mxu0 0.0
        %543 = vmatpush.msra.mxu0 0.0
        %544 = vmatpush.msra.mxu0 0.0
        %545 = vmatpush.msra.mxu0 %v525
        %546 = vmatmul.f32.gmra.mxu0 %v528
        %v547 = vpop.f32.mrf.mxu0
        %v548 = vadd.f32 %v518, %v547
        %549 = vdwg.mxu0
        %s550 = scalar_lea.vmem %s0, 16
        %v551 = vld [vmem:[%s550] sm:$0xff]
        %552 = vrot.lane.b32.xlu0 %v483, 2
        %v553 = vpop.permute.xlu0 %552
        %554 = vrot.lane.b32.xlu0 %v484, 2
        %v555 = vpop.permute.xlu0 %554
        %vm556 = vcmask 15360
        %v557 = vsel %vm556, %v553, %v555
        %v560 = vsel %vm496, %v551, 0
        %562 = vmatpush.msra.mxu0 0.0
        %563 = vmatpush.msra.mxu0 0.0
        %564 = vmatpush.msra.mxu0 0.0
        %565 = vmatpush.msra.mxu0 0.0
        %566 = vmatpush.msra.mxu0 0.0
        %567 = vmatpush.msra.mxu0 0.0
        %568 = vmatpush.msra.mxu0 0.0
        %569 = vmatpush.msra.mxu0 0.0
        %570 = vmatpush.msra.mxu0 0.0
        %571 = vmatpush.msra.mxu0 0.0
        %572 = vmatpush.msra.mxu0 0.0
        %573 = vmatpush.msra.mxu0 0.0
        %574 = vmatpush.msra.mxu0 0.0
        %575 = vmatpush.msra.mxu0 0.0
        %576 = vmatpush.msra.mxu0 0.0
        %577 = vmatpush.msra.mxu0 %v557
        %578 = vmatmul.f32.gmra.mxu0 %v560
        %v579 = vpop.f32.mrf.mxu0
        %v580 = vadd.f32 0.0, %v579
        %581 = vdwg.mxu0
        %v582 = vadd.f32 %v548, %v580
        %s583 = scalar_lea.vmem %s0, 24
        %v584 = vld [vmem:[%s583] sm:$0xff]
        %585 = vrot.lane.b32.xlu0 %v483, 1
        %v586 = vpop.permute.xlu0 %585
        %587 = vrot.lane.b32.xlu0 %v484, 1
        %v588 = vpop.permute.xlu0 %587
        %vm589 = vcmask 7168
        %v590 = vsel %vm589, %v586, %v588
        %v593 = vsel %vm496, %v584, 0
        %595 = vmatpush.msra.mxu0 0.0
        %596 = vmatpush.msra.mxu0 0.0
        %597 = vmatpush.msra.mxu0 0.0
        %598 = vmatpush.msra.mxu0 0.0
        %599 = vmatpush.msra.mxu0 0.0
        %600 = vmatpush.msra.mxu0 0.0
        %601 = vmatpush.msra.mxu0 0.0
        %602 = vmatpush.msra.mxu0 0.0
        %603 = vmatpush.msra.mxu0 0.0
        %604 = vmatpush.msra.mxu0 0.0
        %605 = vmatpush.msra.mxu0 0.0
        %606 = vmatpush.msra.mxu0 0.0
        %607 = vmatpush.msra.mxu0 0.0
        %608 = vmatpush.msra.mxu0 0.0
        %609 = vmatpush.msra.mxu0 0.0
        %610 = vmatpush.msra.mxu0 %v590
        %611 = vmatmul.f32.gmra.mxu0 %v593
        %v612 = vpop.f32.mrf.mxu0
        %v613 = vadd.f32 0.0, %v612
        %614 = vdwg.mxu0
        %v615 = vadd.f32 %v582, %v613
        %s616 = scalar_lea.vmem %s0, 32
        %v617 = vld [vmem:[%s616] sm:$0xff]
        %v619 = vsel %vm496, %v617, 0
        %621 = vmatpush.msra.mxu0 0.0
        %622 = vmatpush.msra.mxu0 0.0
        %623 = vmatpush.msra.mxu0 0.0
        %624 = vmatpush.msra.mxu0 0.0
        %625 = vmatpush.msra.mxu0 0.0
        %626 = vmatpush.msra.mxu0 0.0
        %627 = vmatpush.msra.mxu0 0.0
        %628 = vmatpush.msra.mxu0 0.0
        %629 = vmatpush.msra.mxu0 0.0
        %630 = vmatpush.msra.mxu0 0.0
        %631 = vmatpush.msra.mxu0 0.0
        %632 = vmatpush.msra.mxu0 0.0
        %633 = vmatpush.msra.mxu0 0.0
        %634 = vmatpush.msra.mxu0 0.0
        %635 = vmatpush.msra.mxu0 0.0
        %636 = vmatpush.msra.mxu0 %v484
        %637 = vmatmul.f32.gmra.mxu0 %v619
        %v638 = vpop.f32.mrf.mxu0
        %v639 = vadd.f32 0.0, %v638
        %640 = vdwg.mxu0
        %v641 = vadd.f32 %v615, %v639
        %vm642 = vcmask 1048544
        %643 = vst.msk [vmem:[#allocation2] sm:$0xff] %vm642, %v484
        %645 = vset.pattern.permute.xlu0 0
        %646 = vperm.xlu0 %645, %v472
        %v647 = vpop.permute.xlu0 %646
        %v649 = vadd.f32 %v641, %v647
        %v650 = vmax.f32 %v649, 0.0
        // Predicated region
        $region85: #{tpu_custom_call.1} parent=63 // pred_check
          %p651 = pneg %p476
        $region86: #{tpu_custom_call.1} parent=63 // pred_check_branch
          %653 = sbr.rel (%p651) target = $region88
        $region87: #{tpu_custom_call.1} parent=63 // pred_region
          %654 = vst [vmem:[#allocation3] sm:$0xff] 0.0
        $region88: #{tpu_custom_call.1} parent=63 // pred_fallthru
          _
        %655 = vst [vmem:[#allocation3 + $0x8] sm:$0xff] %v650
        %v656 = vld [vmem:[#allocation6] sm:$0xff]
        %v657 = vld [vmem:[#allocation3] sm:$0xff]
        %v658 = vld [vmem:[#allocation3 + $0x8] sm:$0xff]
        %s659 = scalar_lea.vmem [#allocation6], 8
        %v660 = vld [vmem:[%s659] sm:$0xff]
        %663 = vrot.lane.b32.xlu0 %v657, 3
        %v664 = vpop.permute.xlu0 %663
        %665 = vrot.lane.b32.xlu0 %v658, 3
        %v666 = vpop.permute.xlu0 %665
        %v667 = vsel %vm493, %v664, %v666
        %v670 = vsel %vm496, %v660, 0
        %672 = vmatpush.msra.mxu0 0.0
        %673 = vmatpush.msra.mxu0 0.0
        %674 = vmatpush.msra.mxu0 0.0
        %675 = vmatpush.msra.mxu0 0.0
        %676 = vmatpush.msra.mxu0 0.0
        %677 = vmatpush.msra.mxu0 0.0
        %678 = vmatpush.msra.mxu0 0.0
        %679 = vmatpush.msra.mxu0 0.0
        %680 = vmatpush.msra.mxu0 0.0
        %681 = vmatpush.msra.mxu0 0.0
        %682 = vmatpush.msra.mxu0 0.0
        %683 = vmatpush.msra.mxu0 0.0
        %684 = vmatpush.msra.mxu0 0.0
        %685 = vmatpush.msra.mxu0 0.0
        %686 = vmatpush.msra.mxu0 0.0
        %687 = vmatpush.msra.mxu0 %v667
        %688 = vmatmul.f32.gmra.mxu0 %v670
        %v689 = vpop.f32.mrf.mxu0
        %v690 = vadd.f32 0.0, %v689
        %691 = vdwg.mxu0
        %692 = vrot.lane.b32.xlu0 %v657, 4
        %v693 = vpop.permute.xlu0 %692
        %694 = vrot.lane.b32.xlu0 %v658, 4
        %v695 = vpop.permute.xlu0 %694
        %v696 = vsel %vm524, %v693, %v695
        %v699 = vsel %vm496, %v656, 0
        %701 = vmatpush.msra.mxu0 0.0
        %702 = vmatpush.msra.mxu0 0.0
        %703 = vmatpush.msra.mxu0 0.0
        %704 = vmatpush.msra.mxu0 0.0
        %705 = vmatpush.msra.mxu0 0.0
        %706 = vmatpush.msra.mxu0 0.0
        %707 = vmatpush.msra.mxu0 0.0
        %708 = vmatpush.msra.mxu0 0.0
        %709 = vmatpush.msra.mxu0 0.0
        %710 = vmatpush.msra.mxu0 0.0
        %711 = vmatpush.msra.mxu0 0.0
        %712 = vmatpush.msra.mxu0 0.0
        %713 = vmatpush.msra.mxu0 0.0
        %714 = vmatpush.msra.mxu0 0.0
        %715 = vmatpush.msra.mxu0 0.0
        %716 = vmatpush.msra.mxu0 %v696
        %717 = vmatmul.f32.gmra.mxu0 %v699
        %v718 = vpop.f32.mrf.mxu0
        %v719 = vadd.f32 %v690, %v718
        %720 = vdwg.mxu0
        %s721 = scalar_lea.vmem [#allocation6], 16
        %v722 = vld [vmem:[%s721] sm:$0xff]
        %723 = vrot.lane.b32.xlu0 %v657, 2
        %v724 = vpop.permute.xlu0 %723
        %725 = vrot.lane.b32.xlu0 %v658, 2
        %v726 = vpop.permute.xlu0 %725
        %v727 = vsel %vm556, %v724, %v726
        %v730 = vsel %vm496, %v722, 0
        %732 = vmatpush.msra.mxu0 0.0
        %733 = vmatpush.msra.mxu0 0.0
        %734 = vmatpush.msra.mxu0 0.0
        %735 = vmatpush.msra.mxu0 0.0
        %736 = vmatpush.msra.mxu0 0.0
        %737 = vmatpush.msra.mxu0 0.0
        %738 = vmatpush.msra.mxu0 0.0
        %739 = vmatpush.msra.mxu0 0.0
        %740 = vmatpush.msra.mxu0 0.0
        %741 = vmatpush.msra.mxu0 0.0
        %742 = vmatpush.msra.mxu0 0.0
        %743 = vmatpush.msra.mxu0 0.0
        %744 = vmatpush.msra.mxu0 0.0
        %745 = vmatpush.msra.mxu0 0.0
        %746 = vmatpush.msra.mxu0 0.0
        %747 = vmatpush.msra.mxu0 %v727
        %748 = vmatmul.f32.gmra.mxu0 %v730
        %v749 = vpop.f32.mrf.mxu0
        %v750 = vadd.f32 0.0, %v749
        %751 = vdwg.mxu0
        %v752 = vadd.f32 %v719, %v750
        %s753 = scalar_lea.vmem [#allocation6], 24
        %v754 = vld [vmem:[%s753] sm:$0xff]
        %755 = vrot.lane.b32.xlu0 %v657, 1
        %v756 = vpop.permute.xlu0 %755
        %757 = vrot.lane.b32.xlu0 %v658, 1
        %v758 = vpop.permute.xlu0 %757
        %v759 = vsel %vm589, %v756, %v758
        %v762 = vsel %vm496, %v754, 0
        %764 = vmatpush.msra.mxu0 0.0
        %765 = vmatpush.msra.mxu0 0.0
        %766 = vmatpush.msra.mxu0 0.0
        %767 = vmatpush.msra.mxu0 0.0
        %768 = vmatpush.msra.mxu0 0.0
        %769 = vmatpush.msra.mxu0 0.0
        %770 = vmatpush.msra.mxu0 0.0
        %771 = vmatpush.msra.mxu0 0.0
        %772 = vmatpush.msra.mxu0 0.0
        %773 = vmatpush.msra.mxu0 0.0
        %774 = vmatpush.msra.mxu0 0.0
        %775 = vmatpush.msra.mxu0 0.0
        %776 = vmatpush.msra.mxu0 0.0
        %777 = vmatpush.msra.mxu0 0.0
        %778 = vmatpush.msra.mxu0 0.0
        %779 = vmatpush.msra.mxu0 %v759
        %780 = vmatmul.f32.gmra.mxu0 %v762
        %v781 = vpop.f32.mrf.mxu0
        %v782 = vadd.f32 0.0, %v781
        %783 = vdwg.mxu0
        %v784 = vadd.f32 %v752, %v782
        %s785 = scalar_lea.vmem [#allocation6], 32
        %v786 = vld [vmem:[%s785] sm:$0xff]
        %v788 = vsel %vm496, %v786, 0
        %790 = vmatpush.msra.mxu0 0.0
        %791 = vmatpush.msra.mxu0 0.0
        %792 = vmatpush.msra.mxu0 0.0
        %793 = vmatpush.msra.mxu0 0.0
        %794 = vmatpush.msra.mxu0 0.0
        %795 = vmatpush.msra.mxu0 0.0
        %796 = vmatpush.msra.mxu0 0.0
        %797 = vmatpush.msra.mxu0 0.0
        %798 = vmatpush.msra.mxu0 0.0
        %799 = vmatpush.msra.mxu0 0.0
        %800 = vmatpush.msra.mxu0 0.0
        %801 = vmatpush.msra.mxu0 0.0
        %802 = vmatpush.msra.mxu0 0.0
        %803 = vmatpush.msra.mxu0 0.0
        %804 = vmatpush.msra.mxu0 0.0
        %805 = vmatpush.msra.mxu0 %v658
        %806 = vmatmul.f32.gmra.mxu0 %v788
        %v807 = vpop.f32.mrf.mxu0
        %v808 = vadd.f32 0.0, %v807
        %809 = vdwg.mxu0
        %v810 = vadd.f32 %v784, %v808
        %811 = vst.msk [vmem:[#allocation3] sm:$0xff] %vm642, %v658
        %813 = vset.pattern.permute.xlu0 0
        %814 = vperm.xlu0 %813, %v473
        %v815 = vpop.permute.xlu0 %814
        %v817 = vadd.f32 %v810, %v815
        %v818 = vmax.f32 %v817, 0.0
        %820 = vset.pattern.permute.xlu0 0
        %821 = vperm.xlu0 %820, %v475
        %v822 = vpop.permute.xlu0 %821
        %v825 = vsel %vm496, %v474, 0
        %827 = vmatpush.msra.mxu0 0.0
        %828 = vmatpush.msra.mxu0 0.0
        %829 = vmatpush.msra.mxu0 0.0
        %830 = vmatpush.msra.mxu0 0.0
        %831 = vmatpush.msra.mxu0 0.0
        %832 = vmatpush.msra.mxu0 0.0
        %833 = vmatpush.msra.mxu0 0.0
        %834 = vmatpush.msra.mxu0 0.0
        %835 = vmatpush.msra.mxu0 0.0
        %836 = vmatpush.msra.mxu0 0.0
        %837 = vmatpush.msra.mxu0 0.0
        %838 = vmatpush.msra.mxu0 0.0
        %839 = vmatpush.msra.mxu0 0.0
        %840 = vmatpush.msra.mxu0 0.0
        %841 = vmatpush.msra.mxu0 0.0
        %842 = vmatpush.msra.mxu0 %v471
        %843 = vmatmul.f32.gmra.mxu0 %v825
        %v844 = vpop.f32.mrf.mxu0
        %v845 = vadd.f32 %v822, %v844
        %846 = vdwg.mxu0
        %v847 = vadd.f32 %v818, %v845
        %v848 = vmax.f32 %v847, 0.0
        %v849 = vld [vmem:[%s7] sm:$0xff]
        %v850 = vld [vmem:[%s9] sm:$0xff]
        // Predicated region
        $region89: #{tpu_custom_call.1} parent=63 // pred_check
          %p851 = pneg %p476
        $region90: #{tpu_custom_call.1} parent=63 // pred_check_branch
          %853 = sbr.rel (%p851) target = $region92
        $region91: #{tpu_custom_call.1} parent=63 // pred_region
          %854 = vst [vmem:[#allocation4] sm:$0xff] 0.0
        $region92: #{tpu_custom_call.1} parent=63 // pred_fallthru
          _
        %855 = vst [vmem:[#allocation4 + $0x8] sm:$0xff] %v848
        %v856 = vld [vmem:[#allocation9] sm:$0xff]
        %v857 = vld [vmem:[#allocation4] sm:$0xff]
        %v858 = vld [vmem:[#allocation4 + $0x8] sm:$0xff]
        %s859 = scalar_lea.vmem [#allocation9], 8
        %v860 = vld [vmem:[%s859] sm:$0xff]
        %863 = vrot.lane.b32.xlu0 %v857, 6
        %v864 = vpop.permute.xlu0 %863
        %865 = vrot.lane.b32.xlu0 %v858, 6
        %v866 = vpop.permute.xlu0 %865
        %vm867 = vcmask 48128
        %v868 = vsel %vm867, %v864, %v866
        %v871 = vsel %vm496, %v860, 0
        %873 = vmatpush.msra.mxu0 0.0
        %874 = vmatpush.msra.mxu0 0.0
        %875 = vmatpush.msra.mxu0 0.0
        %876 = vmatpush.msra.mxu0 0.0
        %877 = vmatpush.msra.mxu0 0.0
        %878 = vmatpush.msra.mxu0 0.0
        %879 = vmatpush.msra.mxu0 0.0
        %880 = vmatpush.msra.mxu0 0.0
        %881 = vmatpush.msra.mxu0 0.0
        %882 = vmatpush.msra.mxu0 0.0
        %883 = vmatpush.msra.mxu0 0.0
        %884 = vmatpush.msra.mxu0 0.0
        %885 = vmatpush.msra.mxu0 0.0
        %886 = vmatpush.msra.mxu0 0.0
        %887 = vmatpush.msra.mxu0 0.0
        %888 = vmatpush.msra.mxu0 %v868
        %889 = vmatmul.f32.gmra.mxu0 %v871
        %v890 = vpop.f32.mrf.mxu0
        %v891 = vadd.f32 0.0, %v890
        %892 = vdwg.mxu0
        %893 = vrot.lane.b32.xlu0 %v857, 8
        %v894 = vpop.permute.xlu0 %893
        %895 = vrot.lane.b32.xlu0 %v858, 8
        %v896 = vpop.permute.xlu0 %895
        %v897 = vsel %vm496, %v894, %v896
        %v900 = vsel %vm496, %v856, 0
        %902 = vmatpush.msra.mxu0 0.0
        %903 = vmatpush.msra.mxu0 0.0
        %904 = vmatpush.msra.mxu0 0.0
        %905 = vmatpush.msra.mxu0 0.0
        %906 = vmatpush.msra.mxu0 0.0
        %907 = vmatpush.msra.mxu0 0.0
        %908 = vmatpush.msra.mxu0 0.0
        %909 = vmatpush.msra.mxu0 0.0
        %910 = vmatpush.msra.mxu0 0.0
        %911 = vmatpush.msra.mxu0 0.0
        %912 = vmatpush.msra.mxu0 0.0
        %913 = vmatpush.msra.mxu0 0.0
        %914 = vmatpush.msra.mxu0 0.0
        %915 = vmatpush.msra.mxu0 0.0
        %916 = vmatpush.msra.mxu0 0.0
        %917 = vmatpush.msra.mxu0 %v897
        %918 = vmatmul.f32.gmra.mxu0 %v900
        %v919 = vpop.f32.mrf.mxu0
        %v920 = vadd.f32 %v891, %v919
        %921 = vdwg.mxu0
        %s922 = scalar_lea.vmem [#allocation9], 16
        %v923 = vld [vmem:[%s922] sm:$0xff]
        %924 = vrot.lane.b32.xlu0 %v857, 4
        %v925 = vpop.permute.xlu0 %924
        %926 = vrot.lane.b32.xlu0 %v858, 4
        %v927 = vpop.permute.xlu0 %926
        %v928 = vsel %vm524, %v925, %v927
        %v931 = vsel %vm496, %v923, 0
        %933 = vmatpush.msra.mxu0 0.0
        %934 = vmatpush.msra.mxu0 0.0
        %935 = vmatpush.msra.mxu0 0.0
        %936 = vmatpush.msra.mxu0 0.0
        %937 = vmatpush.msra.mxu0 0.0
        %938 = vmatpush.msra.mxu0 0.0
        %939 = vmatpush.msra.mxu0 0.0
        %940 = vmatpush.msra.mxu0 0.0
        %941 = vmatpush.msra.mxu0 0.0
        %942 = vmatpush.msra.mxu0 0.0
        %943 = vmatpush.msra.mxu0 0.0
        %944 = vmatpush.msra.mxu0 0.0
        %945 = vmatpush.msra.mxu0 0.0
        %946 = vmatpush.msra.mxu0 0.0
        %947 = vmatpush.msra.mxu0 0.0
        %948 = vmatpush.msra.mxu0 %v928
        %949 = vmatmul.f32.gmra.mxu0 %v931
        %v950 = vpop.f32.mrf.mxu0
        %v951 = vadd.f32 0.0, %v950
        %952 = vdwg.mxu0
        %v953 = vadd.f32 %v920, %v951
        %s954 = scalar_lea.vmem [#allocation9], 24
        %v955 = vld [vmem:[%s954] sm:$0xff]
        %956 = vrot.lane.b32.xlu0 %v857, 2
        %v957 = vpop.permute.xlu0 %956
        %958 = vrot.lane.b32.xlu0 %v858, 2
        %v959 = vpop.permute.xlu0 %958
        %v960 = vsel %vm556, %v957, %v959
        %v963 = vsel %vm496, %v955, 0
        %965 = vmatpush.msra.mxu0 0.0
        %966 = vmatpush.msra.mxu0 0.0
        %967 = vmatpush.msra.mxu0 0.0
        %968 = vmatpush.msra.mxu0 0.0
        %969 = vmatpush.msra.mxu0 0.0
        %970 = vmatpush.msra.mxu0 0.0
        %971 = vmatpush.msra.mxu0 0.0
        %972 = vmatpush.msra.mxu0 0.0
        %973 = vmatpush.msra.mxu0 0.0
        %974 = vmatpush.msra.mxu0 0.0
        %975 = vmatpush.msra.mxu0 0.0
        %976 = vmatpush.msra.mxu0 0.0
        %977 = vmatpush.msra.mxu0 0.0
        %978 = vmatpush.msra.mxu0 0.0
        %979 = vmatpush.msra.mxu0 0.0
        %980 = vmatpush.msra.mxu0 %v960
        %981 = vmatmul.f32.gmra.mxu0 %v963
        %v982 = vpop.f32.mrf.mxu0
        %v983 = vadd.f32 0.0, %v982
        %984 = vdwg.mxu0
        %v985 = vadd.f32 %v953, %v983
        %s986 = scalar_lea.vmem [#allocation9], 32
        %v987 = vld [vmem:[%s986] sm:$0xff]
        %v989 = vsel %vm496, %v987, 0
        %991 = vmatpush.msra.mxu0 0.0
        %992 = vmatpush.msra.mxu0 0.0
        %993 = vmatpush.msra.mxu0 0.0
        %994 = vmatpush.msra.mxu0 0.0
        %995 = vmatpush.msra.mxu0 0.0
        %996 = vmatpush.msra.mxu0 0.0
        %997 = vmatpush.msra.mxu0 0.0
        %998 = vmatpush.msra.mxu0 0.0
        %999 = vmatpush.msra.mxu0 0.0
        %1000 = vmatpush.msra.mxu0 0.0
        %1001 = vmatpush.msra.mxu0 0.0
        %1002 = vmatpush.msra.mxu0 0.0
        %1003 = vmatpush.msra.mxu0 0.0
        %1004 = vmatpush.msra.mxu0 0.0
        %1005 = vmatpush.msra.mxu0 0.0
        %1006 = vmatpush.msra.mxu0 %v858
        %1007 = vmatmul.f32.gmra.mxu0 %v989
        %v1008 = vpop.f32.mrf.mxu0
        %v1009 = vadd.f32 0.0, %v1008
        %1010 = vdwg.mxu0
        %v1011 = vadd.f32 %v985, %v1009
        %vm1012 = vcmask 1048512
        %1013 = vst.msk [vmem:[#allocation4] sm:$0xff] %vm1012, %v858
        %1015 = vset.pattern.permute.xlu0 0
        %1016 = vperm.xlu0 %1015, %v849
        %v1017 = vpop.permute.xlu0 %1016
        %v1019 = vadd.f32 %v1011, %v1017
        %v1020 = vmax.f32 %v1019, 0.0
        // Predicated region
        $region93: #{tpu_custom_call.1} parent=63 // pred_check
          %p1021 = pneg %p476
        $region94: #{tpu_custom_call.1} parent=63 // pred_check_branch
          %1023 = sbr.rel (%p1021) target = $region96
        $region95: #{tpu_custom_call.1} parent=63 // pred_region
          %1024 = vst [vmem:[#allocation5] sm:$0xff] 0.0
        $region96: #{tpu_custom_call.1} parent=63 // pred_fallthru
          _
        %1025 = vst [vmem:[#allocation5 + $0x8] sm:$0xff] %v1020
        %v1026 = vld [vmem:[#allocation11] sm:$0xff]
        %v1027 = vld [vmem:[#allocation5] sm:$0xff]
        %v1028 = vld [vmem:[#allocation5 + $0x8] sm:$0xff]
        %s1029 = scalar_lea.vmem [#allocation11], 8
        %v1030 = vld [vmem:[%s1029] sm:$0xff]
        %1033 = vrot.lane.b32.xlu0 %v1027, 6
        %v1034 = vpop.permute.xlu0 %1033
        %1035 = vrot.lane.b32.xlu0 %v1028, 6
        %v1036 = vpop.permute.xlu0 %1035
        %v1037 = vsel %vm867, %v1034, %v1036
        %v1040 = vsel %vm496, %v1030, 0
        %1042 = vmatpush.msra.mxu0 0.0
        %1043 = vmatpush.msra.mxu0 0.0
        %1044 = vmatpush.msra.mxu0 0.0
        %1045 = vmatpush.msra.mxu0 0.0
        %1046 = vmatpush.msra.mxu0 0.0
        %1047 = vmatpush.msra.mxu0 0.0
        %1048 = vmatpush.msra.mxu0 0.0
        %1049 = vmatpush.msra.mxu0 0.0
        %1050 = vmatpush.msra.mxu0 0.0
        %1051 = vmatpush.msra.mxu0 0.0
        %1052 = vmatpush.msra.mxu0 0.0
        %1053 = vmatpush.msra.mxu0 0.0
        %1054 = vmatpush.msra.mxu0 0.0
        %1055 = vmatpush.msra.mxu0 0.0
        %1056 = vmatpush.msra.mxu0 0.0
        %1057 = vmatpush.msra.mxu0 %v1037
        %1058 = vmatmul.f32.gmra.mxu0 %v1040
        %v1059 = vpop.f32.mrf.mxu0
        %v1060 = vadd.f32 0.0, %v1059
        %1061 = vdwg.mxu0
        %1062 = vrot.lane.b32.xlu0 %v1027, 8
        %v1063 = vpop.permute.xlu0 %1062
        %1064 = vrot.lane.b32.xlu0 %v1028, 8
        %v1065 = vpop.permute.xlu0 %1064
        %v1066 = vsel %vm496, %v1063, %v1065
        %v1069 = vsel %vm496, %v1026, 0
        %1071 = vmatpush.msra.mxu0 0.0
        %1072 = vmatpush.msra.mxu0 0.0
        %1073 = vmatpush.msra.mxu0 0.0
        %1074 = vmatpush.msra.mxu0 0.0
        %1075 = vmatpush.msra.mxu0 0.0
        %1076 = vmatpush.msra.mxu0 0.0
        %1077 = vmatpush.msra.mxu0 0.0
        %1078 = vmatpush.msra.mxu0 0.0
        %1079 = vmatpush.msra.mxu0 0.0
        %1080 = vmatpush.msra.mxu0 0.0
        %1081 = vmatpush.msra.mxu0 0.0
        %1082 = vmatpush.msra.mxu0 0.0
        %1083 = vmatpush.msra.mxu0 0.0
        %1084 = vmatpush.msra.mxu0 0.0
        %1085 = vmatpush.msra.mxu0 0.0
        %1086 = vmatpush.msra.mxu0 %v1066
        %1087 = vmatmul.f32.gmra.mxu0 %v1069
        %v1088 = vpop.f32.mrf.mxu0
        %v1089 = vadd.f32 %v1060, %v1088
        %1090 = vdwg.mxu0
        %s1091 = scalar_lea.vmem [#allocation11], 16
        %v1092 = vld [vmem:[%s1091] sm:$0xff]
        %1093 = vrot.lane.b32.xlu0 %v1027, 4
        %v1094 = vpop.permute.xlu0 %1093
        %1095 = vrot.lane.b32.xlu0 %v1028, 4
        %v1096 = vpop.permute.xlu0 %1095
        %v1097 = vsel %vm524, %v1094, %v1096
        %v1100 = vsel %vm496, %v1092, 0
        %1102 = vmatpush.msra.mxu0 0.0
        %1103 = vmatpush.msra.mxu0 0.0
        %1104 = vmatpush.msra.mxu0 0.0
        %1105 = vmatpush.msra.mxu0 0.0
        %1106 = vmatpush.msra.mxu0 0.0
        %1107 = vmatpush.msra.mxu0 0.0
        %1108 = vmatpush.msra.mxu0 0.0
        %1109 = vmatpush.msra.mxu0 0.0
        %1110 = vmatpush.msra.mxu0 0.0
        %1111 = vmatpush.msra.mxu0 0.0
        %1112 = vmatpush.msra.mxu0 0.0
        %1113 = vmatpush.msra.mxu0 0.0
        %1114 = vmatpush.msra.mxu0 0.0
        %1115 = vmatpush.msra.mxu0 0.0
        %1116 = vmatpush.msra.mxu0 0.0
        %1117 = vmatpush.msra.mxu0 %v1097
        %1118 = vmatmul.f32.gmra.mxu0 %v1100
        %v1119 = vpop.f32.mrf.mxu0
        %v1120 = vadd.f32 0.0, %v1119
        %1121 = vdwg.mxu0
        %v1122 = vadd.f32 %v1089, %v1120
        %s1123 = scalar_lea.vmem [#allocation11], 24
        %v1124 = vld [vmem:[%s1123] sm:$0xff]
        %1125 = vrot.lane.b32.xlu0 %v1027, 2
        %v1126 = vpop.permute.xlu0 %1125
        %1127 = vrot.lane.b32.xlu0 %v1028, 2
        %v1128 = vpop.permute.xlu0 %1127
        %v1129 = vsel %vm556, %v1126, %v1128
        %v1132 = vsel %vm496, %v1124, 0
        %1134 = vmatpush.msra.mxu0 0.0
        %1135 = vmatpush.msra.mxu0 0.0
        %1136 = vmatpush.msra.mxu0 0.0
        %1137 = vmatpush.msra.mxu0 0.0
        %1138 = vmatpush.msra.mxu0 0.0
        %1139 = vmatpush.msra.mxu0 0.0
        %1140 = vmatpush.msra.mxu0 0.0
        %1141 = vmatpush.msra.mxu0 0.0
        %1142 = vmatpush.msra.mxu0 0.0
        %1143 = vmatpush.msra.mxu0 0.0
        %1144 = vmatpush.msra.mxu0 0.0
        %1145 = vmatpush.msra.mxu0 0.0
        %1146 = vmatpush.msra.mxu0 0.0
        %1147 = vmatpush.msra.mxu0 0.0
        %1148 = vmatpush.msra.mxu0 0.0
        %1149 = vmatpush.msra.mxu0 %v1129
        %1150 = vmatmul.f32.gmra.mxu0 %v1132
        %v1151 = vpop.f32.mrf.mxu0
        %v1152 = vadd.f32 0.0, %v1151
        %1153 = vdwg.mxu0
        %v1154 = vadd.f32 %v1122, %v1152
        %s1155 = scalar_lea.vmem [#allocation11], 32
        %v1156 = vld [vmem:[%s1155] sm:$0xff]
        %v1158 = vsel %vm496, %v1156, 0
        %1160 = vmatpush.msra.mxu0 0.0
        %1161 = vmatpush.msra.mxu0 0.0
        %1162 = vmatpush.msra.mxu0 0.0
        %1163 = vmatpush.msra.mxu0 0.0
        %1164 = vmatpush.msra.mxu0 0.0
        %1165 = vmatpush.msra.mxu0 0.0
        %1166 = vmatpush.msra.mxu0 0.0
        %1167 = vmatpush.msra.mxu0 0.0
        %1168 = vmatpush.msra.mxu0 0.0
        %1169 = vmatpush.msra.mxu0 0.0
        %1170 = vmatpush.msra.mxu0 0.0
        %1171 = vmatpush.msra.mxu0 0.0
        %1172 = vmatpush.msra.mxu0 0.0
        %1173 = vmatpush.msra.mxu0 0.0
        %1174 = vmatpush.msra.mxu0 0.0
        %1175 = vmatpush.msra.mxu0 %v1028
        %1176 = vmatmul.f32.gmra.mxu0 %v1158
        %v1177 = vpop.f32.mrf.mxu0
        %v1178 = vadd.f32 0.0, %v1177
        %1179 = vdwg.mxu0
        %v1180 = vadd.f32 %v1154, %v1178
        %1181 = vst.msk [vmem:[#allocation5] sm:$0xff] %vm1012, %v1028
        %1183 = vset.pattern.permute.xlu0 0
        %1184 = vperm.xlu0 %1183, %v850
        %v1185 = vpop.permute.xlu0 %1184
        %v1187 = vadd.f32 %v1180, %v1185
        %v1188 = vmax.f32 %v1187, 0.0
        %v1189 = vadd.f32 %v1188, %v848
        %v1190 = vmax.f32 %v1189, 0.0
        %1191 = vst [vmem:[%s470] sm:$0xff] %v1190
        %s1192 = sand.u32 %s290, 1
        %s1193 = scalar_lea.sflag [#allocation8], %s1192
        %s1194 = sand.u32 %s290, 1
        %s1195 = smul.addr %s1194, 8
        %s1196 = scalar_lea.vmem [#allocation14], %s1195
        // Predicated region
        $region97: #{tpu_custom_call.1} parent=63 // pred_check
          %p1197 = pneg %p300
        $region98: #{tpu_custom_call.1} parent=63 // pred_check_branch
          %1199 = sbr.rel (%p1197) target = $region100
        $region99: #{tpu_custom_call.1} parent=63 // pred_region
          %1201 = vsyncadd %s1193, 0
          %s1202 = sadd.s32 %s35, %s34
          %s1203 = smul.addr %s1202, 8
          %s1204 = scalar_lea.hbm %s11, %s1203
          %s1206 = sshll.u32 %s1196, 4
          %s1207 = int_to_ptr.vmem [resolvable:$true] %s1206
          %s1208 = sshll.u32 %s1204, 4
          %s1209 = int_to_ptr.hbm [resolvable:$true] %s1208
          %1211 = dma.vmem_to_hbm [thread:$0]  %s1207, 128, %s1209, %s1193
        $region100: #{tpu_custom_call.1} parent=63 // pred_fallthru
          _
      $region64: #{tpu_custom_call.1} parent=5 // pred_fallthru
        _
      %p1212 = scmp.le.s32.totalorder 2, %s25
      // Predicated region
      $region101: #{tpu_custom_call.1} parent=5 // pred_check
        %p1213 = pneg %p1212
      $region102: #{tpu_custom_call.1} parent=5 // pred_check_branch
        %1215 = sbr.rel (%p1213) target = $region104
      $region103: #{tpu_custom_call.1} parent=5 // pred_region
        %s1216 = ssub.s32 %s25, 2
        // Predicated region
        $region105: #{tpu_custom_call.1} parent=103 // pred_check
          %p1217 = pneg %p306
        $region106: #{tpu_custom_call.1} parent=103 // pred_check_branch
          %1219 = sbr.rel (%p1217) target = $region108
        $region107: #{tpu_custom_call.1} parent=103 // pred_region
          %s1220 = sand.u32 %s291, 1
          %s1221 = scalar_lea.sflag [#allocation8], %s1220
          %s1222 = sand.u32 %s291, 1
          %s1223 = smul.addr %s1222, 8
          %s1224 = scalar_lea.vmem [#allocation14], %s1223
          %1226 = dma.done %s1221, 128
        $region108: #{tpu_custom_call.1} parent=103 // pred_fallthru
          _
      $region104: #{tpu_custom_call.1} parent=5 // pred_fallthru
        _
    $region6: #{tpu_custom_call.1} parent=1 // loop_footer
      %s29 = sadd.s32 1, %s25
    $region7: #{tpu_custom_call.1} parent=1 // loop_footer_branch
      %24 = sbr.rel target = $region3
    $region8: #{tpu_custom_call.1} parent=1 // loop_exit
      _
    %1227 = vsyncpa [#allocation7], 1
    %s1228 = scalar_lea.sflag [#allocation7], 1
    %1229 = vsyncpa %s1228, 1
    %1230 = vsyncpa [#allocation10], 1
    %1231 = vsyncpa [#allocation13], 1
    %s1232 = scalar_lea.sflag [#allocation13], 1
    %1233 = vsyncpa %s1232, 1
    %1234 = vsyncpa [#allocation8], 1
    %s1235 = scalar_lea.sflag [#allocation8], 1
    %1236 = vsyncpa %s1235, 1

</llo_original>
